<compile_context>
chip_gen: v5e
topology: v5e:2x2
jax: 0.10.0
libtpu: 0.0.40
codegen_flags: <defaults>
</compile_context>

<pallas_src>
import jax
import jax.numpy as jnp
from jax.experimental import pallas as pl
from jax.experimental.pallas import tpu as pltpu

K = 7      # conv kernel size
PAD = 3    # conv padding
TPG = 8    # taps per kh-group, padded from 7 to 8 for sublane alignment


def _pick_block_batch(B, C, HW, itemsize):
    """Batch elements per grid step."""
    per_batch = C * HW * itemsize
    # Target ~2 MiB of x per step (amortizes fixed per-step pipeline overhead),
    # cap the static unroll, and keep >= 2 grid steps when B allows so the two
    # v7x TensorCores both get work via dimension_semantics=("parallel",).
    bt = max(1, min(B, (2 << 20) // max(per_batch, 1)))
    bt = min(bt, 8)
    if bt >= B and B > 1:
        bt = max(1, B // 2)
    while B % bt:
        bt -= 1
    return bt


def _conv_taps_and_mask(conv_w, H, W):
    """Host-side constants: reordered conv taps (K*TPG, C) and boundary mask
    (K*TPG, HW).  Within each kh group, row r corresponds to dw = PAD - r so
    the lane shift the kernel needs grows by exactly +1 per row (strided roll).
    Row r == 7 of each group is zero weight + zero mask (sublane padding)."""
    C = conv_w.shape[1]
    HW = H * W
    q = jnp.arange(HW)
    hh = q // W
    ww = q % W
    zeros_c = jnp.zeros((C,), jnp.float32)
    zeros_m = jnp.zeros((HW,), bool)
    tap_w, tap_m = [], []
    for kh in range(K):
        dh = kh - PAD
        for r in range(TPG):
            if r < K:
                dw = PAD - r
                kw = dw + PAD                       # = K - 1 - r
                tap_w.append(conv_w[0, :, kh, kw].astype(jnp.float32))
                tap_m.append((hh + dh >= 0) & (hh + dh < H)
                             & (ww + dw >= 0) & (ww + dw < W))
            else:
                tap_w.append(zeros_c)
                tap_m.append(zeros_m)
    return (jnp.stack(tap_w),                        # (K*TPG, C)
            jnp.stack(tap_m).astype(jnp.float32))    # (K*TPG, HW)


def _make_attention_kernel(Bt, C, Cr, H, W):
    HW = H * W
    # Uniform pre-rotation so every per-group strided roll amount lies in
    # [1, 2*PAD*W + TPG), strictly inside [0, HW).
    pre_shift = (-(PAD * W) - PAD - 1) % HW
    assert 2 * PAD * W + TPG <= HW and pre_shift > 0
    HIGH = jax.lax.Precision.HIGHEST

    def kernel(cb_ref, x_ref, wt_ref, mask_ref, w1_ref, b1_ref, w2_ref, b2_ref,
               o_ref):
        # cb_ref  : SMEM (1,)            conv bias (scalar)
        # x_ref   : VMEM (Bt, C, HW)     Bt batch elements, spatial flattened
        # wt_ref  : VMEM (K*TPG, C)      conv taps (reordered, group-padded)
        # mask_ref: VMEM (K*TPG, HW)     precomputed boundary mask
        # w1_ref  : VMEM (Cr, C), b1_ref (Cr, 1)
        # w2_ref  : VMEM (C, Cr), b2_ref (C, 1)
        # o_ref   : VMEM (Bt, C, HW)
        cb = cb_ref[0]
        wt = wt_ref[...]
        mask = mask_ref[...]
        w1 = w1_ref[...]
        b1 = b1_ref[...]
        w2 = w2_ref[...]
        b2 = b2_ref[...]

        for b in range(Bt):                              # static unroll
            xb = x_ref[b]                                # (C, HW)

            # ---------- SpatialGate: 7x7 conv -> sigmoid -> (1, HW) ----------
            # Channel reduction for ALL taps in one MXU matmul.
            y = jnp.dot(wt, xb, preferred_element_type=jnp.float32,
                        precision=HIGH)                  # (K*TPG, HW)
            y = pltpu.roll(y, shift=pre_shift, axis=1)   # uniform pre-rotation
            partials = []
            for kh in range(K):
                dh = kh - PAD
                base = (PAD - dh) * W + 1                # in [1, 2*PAD*W + 1]
                grp = y[kh * TPG:(kh + 1) * TPG, :]      # aligned (8, HW) slice
                # Row r gets shift base + r (taps pre-ordered so the needed
                # shift grows by +1 per row).  Any lane that wraps around
                # corresponds to an out-of-bounds tap and is zeroed by mask.
                grp = pltpu.roll(grp, shift=base, axis=1,
                                 stride=1, stride_axis=0)
                grp = grp * mask[kh * TPG:(kh + 1) * TPG, :]
                partials.append(jnp.sum(grp, axis=0, keepdims=True))
            conv = ((partials[0] + partials[1]) + (partials[2] + partials[3])
                    + ((partials[4] + partials[5]) + partials[6]))  # (1, HW)
            scale = jax.nn.sigmoid(conv + cb)                       # (1, HW)

            # ---------- ChannelGate: GAP + tiny MLP (column form) ----------
            avg = jnp.sum(xb, axis=1, keepdims=True) * (1.0 / HW)   # (C, 1)
            h1 = jnp.dot(w1, avg, preferred_element_type=jnp.float32,
                         precision=HIGH) + b1
            h1 = jnp.maximum(h1, 0.0)                               # (Cr, 1)
            att = jax.nn.sigmoid(
                jnp.dot(w2, h1, preferred_element_type=jnp.float32,
                        precision=HIGH) + b2)                       # (C, 1)

            # ---------- fused combine: x*att + x*scale == x*(att+scale) -----
            o_ref[b] = (xb * (att + scale)).astype(o_ref.dtype)

    return kernel


def attention_module(x, conv_w, conv_b, w1, b1, w2, b2):
    """x: (B, C, H, W) f32.  conv_w: (1, C, 7, 7), conv_b: (1,).
    w1: (Cr, C), b1: (Cr,), w2: (C, Cr), b2: (C,)   (PyTorch Linear layout)."""
    B, C, H, W = x.shape
    HW = H * W
    Cr = w1.shape[0]
    # Lane/sublane-dense blocks (demo shapes satisfy these).
    assert HW % 128 == 0 and C % 8 == 0
    # TODO(synk): generalize to HW not a multiple of 128 (e.g. 14x14 maps).

    Bt = _pick_block_batch(B, C, HW, jnp.dtype(x.dtype).itemsize)

    # Layout plumbing only (reshapes / stacks of tiny weight tensors).
    x_flat = x.reshape(B, C, HW)                        # HW on the lane axis
    w_taps, mask = _conv_taps_and_mask(conv_w, H, W)    # (K*TPG, C), (K*TPG, HW)
    b1c = b1.reshape(Cr, 1).astype(jnp.float32)
    b2c = b2.reshape(C, 1).astype(jnp.float32)
    cb = conv_b.astype(jnp.float32)                     # (1,) scalar

    kernel = _make_attention_kernel(Bt, C, Cr, H, W)

    out_flat = pl.pallas_call(
        kernel,
        out_shape=jax.ShapeDtypeStruct((B, C, HW), x.dtype),
        grid=(B // Bt,),
        in_specs=[
            pl.BlockSpec(memory_space=pltpu.MemorySpace.SMEM),    # conv bias
            pl.BlockSpec((Bt, C, HW), lambda i: (i, 0, 0)),       # x block
            pl.BlockSpec((K * TPG, C), lambda i: (0, 0)),         # conv taps
            pl.BlockSpec((K * TPG, HW), lambda i: (0, 0)),        # boundary mask
            pl.BlockSpec((Cr, C), lambda i: (0, 0)),              # mlp W1
            pl.BlockSpec((Cr, 1), lambda i: (0, 0)),              # mlp b1
            pl.BlockSpec((C, Cr), lambda i: (0, 0)),              # mlp W2
            pl.BlockSpec((C, 1), lambda i: (0, 0)),               # mlp b2
        ],
        out_specs=pl.BlockSpec((Bt, C, HW), lambda i: (i, 0, 0)),
        compiler_params=pltpu.CompilerParams(
            dimension_semantics=("parallel",)),
    )(cb, x_flat, w_taps, mask, w1.astype(jnp.float32), b1c,
      w2.astype(jnp.float32), b2c)

    return out_flat.reshape(B, C, H, W)


def attention_ref(x, conv_w, conv_b, w1, b1, w2, b2):
    """Pure-JAX reference matching the PyTorch AttentionModule forward."""
    conv = jax.lax.conv_general_dilated(
        x, conv_w, window_strides=(1, 1),
        padding=((PAD, PAD), (PAD, PAD)),
        dimension_numbers=("NCHW", "OIHW", "NCHW"))
    spatial = x * jax.nn.sigmoid(conv + conv_b.reshape(1, -1, 1, 1))
    avg = jnp.mean(x, axis=(2, 3))                                 # (B, C)
    h = jnp.maximum(avg @ w1.T + b1, 0.0)
    att = jax.nn.sigmoid(h @ w2.T + b2)                            # (B, C)
    channel = x * att[:, :, None, None]
    return channel + spatial


if __name__ == "__main__":
    B, C, H, W = 2, 64, 16, 16
    R = 16                      # AttentionModule default reduction_ratio
    Cr = C // R

    key = jax.random.PRNGKey(0)
    kx, kcw, kcb, k1w, k1b, k2w, k2b = jax.random.split(key, 7)

    x = jax.random.normal(kx, (B, C, H, W), dtype=jnp.float32)

    # PyTorch-default-style uniform init (deterministic).
    cbnd = 1.0 / (C * K * K) ** 0.5
    conv_w = jax.random.uniform(kcw, (1, C, K, K), jnp.float32, -cbnd, cbnd)
    conv_b = jax.random.uniform(kcb, (1,), jnp.float32, -cbnd, cbnd)
    bnd1 = 1.0 / C ** 0.5
    w1 = jax.random.uniform(k1w, (Cr, C), jnp.float32, -bnd1, bnd1)
    b1 = jax.random.uniform(k1b, (Cr,), jnp.float32, -bnd1, bnd1)
    bnd2 = 1.0 / Cr ** 0.5
    w2 = jax.random.uniform(k2w, (C, Cr), jnp.float32, -bnd2, bnd2)
    b2 = jax.random.uniform(k2b, (C,), jnp.float32, -bnd2, bnd2)

    out = attention_module(x, conv_w, conv_b, w1, b1, w2, b2)
    out = jax.block_until_ready(out)

    ref = attention_ref(x, conv_w, conv_b, w1, b1, w2, b2)
    assert out.shape == (B, C, H, W)
    assert jnp.allclose(out, ref, rtol=1e-2, atol=1e-2), "mismatch vs reference"

    print("KERNEL_OK")
</pallas_src>

<mosaic_0001>
module attributes {stable_mosaic.version = 11 : i64} {
  func.func @kernel(%arg0: i32, %arg1: memref<1xf32, #tpu.memory_space<smem>>, %arg2: memref<1x64x256xf32, #tpu.memory_space<vmem>>, %arg3: memref<56x64xf32, #tpu.memory_space<vmem>>, %arg4: memref<56x256xf32, #tpu.memory_space<vmem>>, %arg5: memref<4x64xf32, #tpu.memory_space<vmem>>, %arg6: memref<4x1xf32, #tpu.memory_space<vmem>>, %arg7: memref<64x4xf32, #tpu.memory_space<vmem>>, %arg8: memref<64x1xf32, #tpu.memory_space<vmem>>, %arg9: memref<1x64x256xf32, #tpu.memory_space<vmem>>) attributes {dimension_semantics = [#tpu.dimension_semantics<parallel>], iteration_bounds = array<i64: 2>, scalar_prefetch = 0 : i64, scratch_operands = 0 : i64, tpu.core_type = #tpu.core_type<tc>, window_params = [{transform_indices = @transform_0, window_bounds = array<i64: 1>}, {transform_indices = @transform_1, window_bounds = array<i64: 1, 64, 256>}, {pipeline_mode = #tpu.pipeline_mode<synchronous>, transform_indices = @transform_2, window_bounds = array<i64: 56, 64>}, {pipeline_mode = #tpu.pipeline_mode<synchronous>, transform_indices = @transform_3, window_bounds = array<i64: 56, 256>}, {pipeline_mode = #tpu.pipeline_mode<synchronous>, transform_indices = @transform_4, window_bounds = array<i64: 4, 64>}, {pipeline_mode = #tpu.pipeline_mode<synchronous>, transform_indices = @transform_5, window_bounds = array<i64: 4, 1>}, {pipeline_mode = #tpu.pipeline_mode<synchronous>, transform_indices = @transform_6, window_bounds = array<i64: 64, 4>}, {pipeline_mode = #tpu.pipeline_mode<synchronous>, transform_indices = @transform_7, window_bounds = array<i64: 64, 1>}, {transform_indices = @transform_8, window_bounds = array<i64: 1, 64, 256>}]} {
    %c0 = arith.constant 0 : index
    %0 = memref.load %arg1[%c0] : memref<1xf32, #tpu.memory_space<smem>>
    %c0_0 = arith.constant 0 : index
    %c0_1 = arith.constant 0 : index
    %1 = vector.load %arg3[%c0_0, %c0_1] : memref<56x64xf32, #tpu.memory_space<vmem>>, vector<56x64xf32>
    %c0_2 = arith.constant 0 : index
    %c0_3 = arith.constant 0 : index
    %2 = vector.load %arg4[%c0_2, %c0_3] : memref<56x256xf32, #tpu.memory_space<vmem>>, vector<56x256xf32>
    %c0_4 = arith.constant 0 : index
    %c0_5 = arith.constant 0 : index
    %3 = vector.load %arg5[%c0_4, %c0_5] : memref<4x64xf32, #tpu.memory_space<vmem>>, vector<4x64xf32>
    %c0_6 = arith.constant 0 : index
    %c0_7 = arith.constant 0 : index
    %4 = vector.load %arg6[%c0_6, %c0_7] : memref<4x1xf32, #tpu.memory_space<vmem>>, vector<4x1xf32>
    %c0_8 = arith.constant 0 : index
    %c0_9 = arith.constant 0 : index
    %5 = vector.load %arg7[%c0_8, %c0_9] : memref<64x4xf32, #tpu.memory_space<vmem>>, vector<64x4xf32>
    %c0_10 = arith.constant 0 : index
    %c0_11 = arith.constant 0 : index
    %6 = vector.load %arg8[%c0_10, %c0_11] : memref<64x1xf32, #tpu.memory_space<vmem>>, vector<64x1xf32>
    %c0_12 = arith.constant 0 : index
    %c0_13 = arith.constant 0 : index
    %c0_14 = arith.constant 0 : index
    %7 = vector.load %arg2[%c0_12, %c0_13, %c0_14] : memref<1x64x256xf32, #tpu.memory_space<vmem>>, vector<1x64x256xf32>
    %8 = vector.shape_cast %7 : vector<1x64x256xf32> to vector<64x256xf32>
    %cst = arith.constant dense<0.000000e+00> : vector<56x256xf32>
    %9 = tpu.matmul %1, %8, %cst {dimension_numbers = #tpu.dot_dimension_numbers<[1], [0], [0], [1], [0, 0, 1, 1], [], []>, precision = #tpu.contract_precision<fp32>} : vector<56x64xf32>, vector<64x256xf32>, vector<56x256xf32> -> vector<56x256xf32>
    %c204_i32 = arith.constant 204 : i32
    %10 = tpu.dynamic_rotate %9 by %c204_i32 dim 1 : vector<56x256xf32>, i32 -> vector<56x256xf32>
    %11 = vector.extract_strided_slice %10 {offsets = [0, 0], sizes = [8, 256], strides = [1, 1]} : vector<56x256xf32> to vector<8x256xf32>
    %c97_i32 = arith.constant 97 : i32
    %12 = tpu.dynamic_rotate %11 by %c97_i32 dim 1 {stride = 1 : si32, stride_dimension = 0 : si32} : vector<8x256xf32>, i32 -> vector<8x256xf32>
    %13 = vector.extract_strided_slice %2 {offsets = [0, 0], sizes = [8, 256], strides = [1, 1]} : vector<56x256xf32> to vector<8x256xf32>
    %14 = arith.mulf %12, %13 : vector<8x256xf32>
    %cst_15 = arith.constant dense<0.000000e+00> : vector<256xf32>
    %15 = vector.multi_reduction <add>, %14, %cst_15 [0] : vector<8x256xf32> to vector<256xf32>
    %16 = vector.shape_cast %15 : vector<256xf32> to vector<1x256xf32>
    %17 = vector.extract_strided_slice %10 {offsets = [8, 0], sizes = [8, 256], strides = [1, 1]} : vector<56x256xf32> to vector<8x256xf32>
    %c81_i32 = arith.constant 81 : i32
    %18 = tpu.dynamic_rotate %17 by %c81_i32 dim 1 {stride = 1 : si32, stride_dimension = 0 : si32} : vector<8x256xf32>, i32 -> vector<8x256xf32>
    %19 = vector.extract_strided_slice %2 {offsets = [8, 0], sizes = [8, 256], strides = [1, 1]} : vector<56x256xf32> to vector<8x256xf32>
    %20 = arith.mulf %18, %19 : vector<8x256xf32>
    %cst_16 = arith.constant dense<0.000000e+00> : vector<256xf32>
    %21 = vector.multi_reduction <add>, %20, %cst_16 [0] : vector<8x256xf32> to vector<256xf32>
    %22 = vector.shape_cast %21 : vector<256xf32> to vector<1x256xf32>
    %23 = vector.extract_strided_slice %10 {offsets = [16, 0], sizes = [8, 256], strides = [1, 1]} : vector<56x256xf32> to vector<8x256xf32>
    %c65_i32 = arith.constant 65 : i32
    %24 = tpu.dynamic_rotate %23 by %c65_i32 dim 1 {stride = 1 : si32, stride_dimension = 0 : si32} : vector<8x256xf32>, i32 -> vector<8x256xf32>
    %25 = vector.extract_strided_slice %2 {offsets = [16, 0], sizes = [8, 256], strides = [1, 1]} : vector<56x256xf32> to vector<8x256xf32>
    %26 = arith.mulf %24, %25 : vector<8x256xf32>
    %cst_17 = arith.constant dense<0.000000e+00> : vector<256xf32>
    %27 = vector.multi_reduction <add>, %26, %cst_17 [0] : vector<8x256xf32> to vector<256xf32>
    %28 = vector.shape_cast %27 : vector<256xf32> to vector<1x256xf32>
    %29 = vector.extract_strided_slice %10 {offsets = [24, 0], sizes = [8, 256], strides = [1, 1]} : vector<56x256xf32> to vector<8x256xf32>
    %c49_i32 = arith.constant 49 : i32
    %30 = tpu.dynamic_rotate %29 by %c49_i32 dim 1 {stride = 1 : si32, stride_dimension = 0 : si32} : vector<8x256xf32>, i32 -> vector<8x256xf32>
    %31 = vector.extract_strided_slice %2 {offsets = [24, 0], sizes = [8, 256], strides = [1, 1]} : vector<56x256xf32> to vector<8x256xf32>
    %32 = arith.mulf %30, %31 : vector<8x256xf32>
    %cst_18 = arith.constant dense<0.000000e+00> : vector<256xf32>
    %33 = vector.multi_reduction <add>, %32, %cst_18 [0] : vector<8x256xf32> to vector<256xf32>
    %34 = vector.shape_cast %33 : vector<256xf32> to vector<1x256xf32>
    %35 = vector.extract_strided_slice %10 {offsets = [32, 0], sizes = [8, 256], strides = [1, 1]} : vector<56x256xf32> to vector<8x256xf32>
    %c33_i32 = arith.constant 33 : i32
    %36 = tpu.dynamic_rotate %35 by %c33_i32 dim 1 {stride = 1 : si32, stride_dimension = 0 : si32} : vector<8x256xf32>, i32 -> vector<8x256xf32>
    %37 = vector.extract_strided_slice %2 {offsets = [32, 0], sizes = [8, 256], strides = [1, 1]} : vector<56x256xf32> to vector<8x256xf32>
    %38 = arith.mulf %36, %37 : vector<8x256xf32>
    %cst_19 = arith.constant dense<0.000000e+00> : vector<256xf32>
    %39 = vector.multi_reduction <add>, %38, %cst_19 [0] : vector<8x256xf32> to vector<256xf32>
    %40 = vector.shape_cast %39 : vector<256xf32> to vector<1x256xf32>
    %41 = vector.extract_strided_slice %10 {offsets = [40, 0], sizes = [8, 256], strides = [1, 1]} : vector<56x256xf32> to vector<8x256xf32>
    %c17_i32 = arith.constant 17 : i32
    %42 = tpu.dynamic_rotate %41 by %c17_i32 dim 1 {stride = 1 : si32, stride_dimension = 0 : si32} : vector<8x256xf32>, i32 -> vector<8x256xf32>
    %43 = vector.extract_strided_slice %2 {offsets = [40, 0], sizes = [8, 256], strides = [1, 1]} : vector<56x256xf32> to vector<8x256xf32>
    %44 = arith.mulf %42, %43 : vector<8x256xf32>
    %cst_20 = arith.constant dense<0.000000e+00> : vector<256xf32>
    %45 = vector.multi_reduction <add>, %44, %cst_20 [0] : vector<8x256xf32> to vector<256xf32>
    %46 = vector.shape_cast %45 : vector<256xf32> to vector<1x256xf32>
    %47 = vector.extract_strided_slice %10 {offsets = [48, 0], sizes = [8, 256], strides = [1, 1]} : vector<56x256xf32> to vector<8x256xf32>
    %c1_i32 = arith.constant 1 : i32
    %48 = tpu.dynamic_rotate %47 by %c1_i32 dim 1 {stride = 1 : si32, stride_dimension = 0 : si32} : vector<8x256xf32>, i32 -> vector<8x256xf32>
    %49 = vector.extract_strided_slice %2 {offsets = [48, 0], sizes = [8, 256], strides = [1, 1]} : vector<56x256xf32> to vector<8x256xf32>
    %50 = arith.mulf %48, %49 : vector<8x256xf32>
    %cst_21 = arith.constant dense<0.000000e+00> : vector<256xf32>
    %51 = vector.multi_reduction <add>, %50, %cst_21 [0] : vector<8x256xf32> to vector<256xf32>
    %52 = vector.shape_cast %51 : vector<256xf32> to vector<1x256xf32>
    %53 = arith.addf %16, %22 : vector<1x256xf32>
    %54 = arith.addf %28, %34 : vector<1x256xf32>
    %55 = arith.addf %53, %54 : vector<1x256xf32>
    %56 = arith.addf %40, %46 : vector<1x256xf32>
    %57 = arith.addf %56, %52 : vector<1x256xf32>
    %58 = arith.addf %55, %57 : vector<1x256xf32>
    %59 = vector.broadcast %0 : f32 to vector<1x256xf32>
    %60 = arith.addf %58, %59 : vector<1x256xf32>
    %61 = arith.negf %60 : vector<1x256xf32>
    %62 = math.exp %61 : vector<1x256xf32>
    %cst_22 = arith.constant 1.000000e+00 : f32
    %63 = vector.broadcast %cst_22 : f32 to vector<1x256xf32>
    %64 = arith.addf %63, %62 : vector<1x256xf32>
    %65 = arith.divf %63, %64 : vector<1x256xf32>
    %cst_23 = arith.constant dense<0.000000e+00> : vector<64xf32>
    %66 = vector.multi_reduction <add>, %8, %cst_23 [1] : vector<64x256xf32> to vector<64xf32>
    %67 = vector.shape_cast %66 : vector<64xf32> to vector<64x1xf32>
    %cst_24 = arith.constant 3.906250e-03 : f32
    %68 = vector.broadcast %cst_24 : f32 to vector<64x1xf32>
    %69 = arith.mulf %67, %68 : vector<64x1xf32>
    %cst_25 = arith.constant dense<0.000000e+00> : vector<4x1xf32>
    %70 = tpu.matmul %3, %69, %cst_25 {dimension_numbers = #tpu.dot_dimension_numbers<[1], [0], [0], [1], [0, 0, 1, 1], [], []>, precision = #tpu.contract_precision<fp32>} : vector<4x64xf32>, vector<64x1xf32>, vector<4x1xf32> -> vector<4x1xf32>
    %71 = arith.addf %70, %4 : vector<4x1xf32>
    %cst_26 = arith.constant 0.000000e+00 : f32
    %72 = vector.broadcast %cst_26 : f32 to vector<4x1xf32>
    %73 = arith.maximumf %71, %72 : vector<4x1xf32>
    %cst_27 = arith.constant dense<0.000000e+00> : vector<64x1xf32>
    %74 = tpu.matmul %5, %73, %cst_27 {dimension_numbers = #tpu.dot_dimension_numbers<[1], [0], [0], [1], [0, 0, 1, 1], [], []>, precision = #tpu.contract_precision<fp32>} : vector<64x4xf32>, vector<4x1xf32>, vector<64x1xf32> -> vector<64x1xf32>
    %75 = arith.addf %74, %6 : vector<64x1xf32>
    %76 = arith.negf %75 : vector<64x1xf32>
    %77 = math.exp %76 : vector<64x1xf32>
    %cst_28 = arith.constant 1.000000e+00 : f32
    %78 = vector.broadcast %cst_28 : f32 to vector<64x1xf32>
    %79 = arith.addf %78, %77 : vector<64x1xf32>
    %80 = arith.divf %78, %79 : vector<64x1xf32>
    %81 = vector.broadcast %80 : vector<64x1xf32> to vector<64x256xf32>
    %82 = vector.broadcast %65 : vector<1x256xf32> to vector<64x256xf32>
    %83 = arith.addf %81, %82 : vector<64x256xf32>
    %84 = arith.mulf %8, %83 : vector<64x256xf32>
    %c0_29 = arith.constant 0 : index
    %c0_30 = arith.constant 0 : index
    %c0_31 = arith.constant 0 : index
    %85 = vector.load %arg9[%c0_29, %c0_30, %c0_31] : memref<1x64x256xf32, #tpu.memory_space<vmem>>, vector<1x64x256xf32>
    %86 = vector.shape_cast %85 : vector<1x64x256xf32> to vector<64x256xf32>
    %87 = vector.shape_cast %84 : vector<64x256xf32> to vector<1x64x256xf32>
    tpu.vector_store %arg9[%c0_29, %c0_30, %c0_31], %87 {strides = array<i32>} : memref<1x64x256xf32, #tpu.memory_space<vmem>>, vector<1x64x256xf32>,
    return
  }
  func.func @transform_0(%arg0: i32) -> i32 {
    %c0_i32 = arith.constant 0 : i32
    %c0_i32_0 = arith.constant 0 : i32
    return %c0_i32 : i32
  }
  func.func @transform_1(%arg0: i32) -> (i32, i32, i32) {
    %c0_i32 = arith.constant 0 : i32
    %c0_i32_0 = arith.constant 0 : i32
    %c0_i32_1 = arith.constant 0 : i32
    return %arg0, %c0_i32, %c0_i32_0 : i32, i32, i32
  }
  func.func @transform_2(%arg0: i32) -> (i32, i32) {
    %c0_i32 = arith.constant 0 : i32
    %c0_i32_0 = arith.constant 0 : i32
    %c0_i32_1 = arith.constant 0 : i32
    return %c0_i32, %c0_i32_0 : i32, i32
  }
  func.func @transform_3(%arg0: i32) -> (i32, i32) {
    %c0_i32 = arith.constant 0 : i32
    %c0_i32_0 = arith.constant 0 : i32
    %c0_i32_1 = arith.constant 0 : i32
    return %c0_i32, %c0_i32_0 : i32, i32
  }
  func.func @transform_4(%arg0: i32) -> (i32, i32) {
    %c0_i32 = arith.constant 0 : i32
    %c0_i32_0 = arith.constant 0 : i32
    %c0_i32_1 = arith.constant 0 : i32
    return %c0_i32, %c0_i32_0 : i32, i32
  }
  func.func @transform_5(%arg0: i32) -> (i32, i32) {
    %c0_i32 = arith.constant 0 : i32
    %c0_i32_0 = arith.constant 0 : i32
    %c0_i32_1 = arith.constant 0 : i32
    return %c0_i32, %c0_i32_0 : i32, i32
  }
  func.func @transform_6(%arg0: i32) -> (i32, i32) {
    %c0_i32 = arith.constant 0 : i32
    %c0_i32_0 = arith.constant 0 : i32
    %c0_i32_1 = arith.constant 0 : i32
    return %c0_i32, %c0_i32_0 : i32, i32
  }
  func.func @transform_7(%arg0: i32) -> (i32, i32) {
    %c0_i32 = arith.constant 0 : i32
    %c0_i32_0 = arith.constant 0 : i32
    %c0_i32_1 = arith.constant 0 : i32
    return %c0_i32, %c0_i32_0 : i32, i32
  }
  func.func @transform_8(%arg0: i32) -> (i32, i32, i32) {
    %c0_i32 = arith.constant 0 : i32
    %c0_i32_0 = arith.constant 0 : i32
    %c0_i32_1 = arith.constant 0 : i32
    return %arg0, %c0_i32, %c0_i32_0 : i32, i32, i32
  }
}

</mosaic_0001>

<llo_original>
// kernel: tpu_custom_call.1
$region0: #{tpu_custom_call.1}
  #allocation0 [shape = 'u32[]', space=smem, size = 0x4, offset = 0x4, fixed_abs, tag = 'smem constant byte address 0x4 - core index']
  #allocation1 [shape = 'u32[72,128]{1,0:T(1,128)}', space=vmem, size = 0x9000, scoped, tag = 'internal scratch']
  #allocation2 [shape = 'f32[1]{0:T(128)S(6)}', space=smem, size = 0x200, scoped, tag = 'scoped memory for tpu_custom_call.1']
  %s0 = inlined_call_operand.<no memory space> [shape: f32[1], index: 0, kind: input, shape index: {}]
  %s1 = inlined_call_operand.hbm [shape: f32[2,64,256], index: 1, kind: input, shape index: {}]
  %s2 = inlined_call_operand.hbm [shape: f32[56,64], index: 2, kind: input, shape index: {}]
  %s3 = inlined_call_operand.vmem [shape: f32[56,256], index: 3, kind: input, shape index: {}]
  %s4 = inlined_call_operand.vmem [shape: f32[4,64], index: 4, kind: input, shape index: {}]
  %s5 = inlined_call_operand.vmem [shape: f32[4,1], index: 5, kind: input, shape index: {}]
  %s6 = inlined_call_operand.vmem [shape: f32[64,4], index: 6, kind: input, shape index: {}]
  %s7 = inlined_call_operand.vmem [shape: f32[64,1], index: 7, kind: input, shape index: {}]
  %s8 = inlined_call_operand.hbm [shape: f32[2,64,256], index: 8, kind: output, shape index: {}]
  %s9 = sld [smem:[#allocation0]]
  $region73: #{tpu_custom_call.1} parent=0
    _
  %s11 = ssub.s32 1, %s9
  %s12 = scalar_select 0, %s11, %s9
  %13 = sst [smem:[#allocation2]] %s0
  $region1: #{tpu_custom_call.1} parent=0
    #allocation3 [shape = 'u8[131072]{0}', space=vmem, size = 0x20000, scoped, tag = 'input window, operand 1']
    #allocation4 [shape = 's32[2]{0}', space=sflag, size = 0x8, scoped, tag = 'scoped memory for tpu_custom_call.1']
    #allocation5 [shape = 's32[2]{0}', space=sflag, size = 0x8, scoped, tag = 'scoped memory for tpu_custom_call.1']
    #allocation6 [shape = 'u8[28672]{0}', space=vmem, size = 0x7000, scoped, tag = 'input window, operand 2, single buffered']
    #allocation7 [shape = 's32[1]{0}', space=sflag, size = 0x4, scoped, tag = 'scoped memory for tpu_custom_call.1']
    #allocation8 [shape = 'u8[131072]{0}', space=vmem, size = 0x20000, scoped, tag = 'output window, operand 0']
    %14 = vsyncpa [#allocation4], 0
    %s15 = scalar_lea.sflag [#allocation4], 1
    %16 = vsyncpa %s15, 0
    %17 = vsyncpa [#allocation7], 0
    %18 = vsyncpa [#allocation5], 0
    %s19 = scalar_lea.sflag [#allocation5], 1
    %20 = vsyncpa %s19, 0
    loop: start=0, step=1, limit=4
    $region2: #{tpu_custom_call.1} parent=1 // loop_pre_header
      _
    $region3: #{tpu_custom_call.1} parent=1 // loop_header
      %s22 = sphi 0, %s26
      %p23 = scmp.ge.s32.totalorder %s22, 4
      %s30 = sphi 0, %s30
      %s32 = sphi 0, %s30
      %s33 = sphi 0, %s32
      %s47 = sphi 0, %s33
      %s53 = sphi 0, %s55
      %s56 = sphi 0, %s53
      %s57 = sphi 0, %s56
      %s73 = sphi 0, %s57
      %s77 = sphi 0, %s77
      %s79 = sphi 0, %s77
      %s80 = sphi 0, %s79
      %s94 = sphi 0, %s80
      %s98 = sphi 0, %s98
      %s100 = sphi 0, %s98
      %s101 = sphi 0, %s100
      %s115 = sphi 0, %s101
      %s119 = sphi 0, %s119
      %s121 = sphi 0, %s119
      %s122 = sphi 0, %s121
      %s136 = sphi 0, %s122
      %s140 = sphi 0, %s140
      %s142 = sphi 0, %s140
      %s143 = sphi 0, %s142
      %s157 = sphi 0, %s143
      %s161 = sphi 0, %s161
      %s163 = sphi 0, %s161
      %s164 = sphi 0, %s163
      %s178 = sphi 0, %s164
      %s182 = sphi 0, %s182
      %s184 = sphi 0, %s182
      %s185 = sphi 0, %s184
      %s199 = sphi 0, %s185
      %s205 = sphi 0, %s207
      %s208 = sphi 0, %s205
      %s209 = sphi 0, %s208
      %s225 = sphi 0, %s209
    $region4: #{tpu_custom_call.1} parent=1 // loop_header_branch
      %25 = sbr.rel (%p23) target = $region8
    $region5: #{tpu_custom_call.1} parent=1 // loop_body
      %s27 = ssub.s32 %s22, 1
      %s28 = ssub.s32 %s22, 2
      %s29 = sadd.s32 %s22, 1
      %s31 = sadd.s32 %s30, 1
      %p34 = scmp.eq.s32.totalorder %s22, 1
      %p35 = scmp.ne.s32.totalorder %s30, %s32
      %p36 = scmp.eq.s32.totalorder %s22, 0
      %p37 = por %p35, %p36
      %p38 = scmp.ne.s32.totalorder %s30, %s32
      %p39 = scmp.eq.s32.totalorder %s27, 1
      %p40 = por %p38, %p39
      %p41 = scmp.ne.s32.totalorder %s32, %s33
      %p42 = scmp.eq.s32.totalorder %s27, 0
      %p43 = por %p41, %p42
      %p44 = scmp.ne.s32.totalorder %s32, %s33
      %p45 = scmp.eq.s32.totalorder %s28, 1
      %p46 = por %p44, %p45
      %p48 = scmp.ne.s32.totalorder %s33, %s47
      %p49 = scmp.eq.s32.totalorder %s28, 0
      %p50 = por %p48, %p49
      %s51 = ssub.s32 %s22, %s29
      %p52 = scmp.eq.s32.totalorder %s51, 0
      %s54 = sadd.s32 %s53, 1
      %s55 = scalar_select %p52, %s53, %s54
      %p58 = pneg %p52
      %p59 = scmp.eq.s32.totalorder %s22, 1
      %p60 = por %p58, %p59
      %p61 = scmp.ne.s32.totalorder %s53, %s56
      %p62 = scmp.eq.s32.totalorder %s22, 0
      %p63 = por %p61, %p62
      %p64 = scmp.ne.s32.totalorder %s53, %s56
      %p65 = scmp.eq.s32.totalorder %s27, 1
      %p66 = por %p64, %p65
      %p67 = scmp.ne.s32.totalorder %s56, %s57
      %p68 = scmp.eq.s32.totalorder %s27, 0
      %p69 = por %p67, %p68
      %p70 = scmp.ne.s32.totalorder %s56, %s57
      %p71 = scmp.eq.s32.totalorder %s28, 1
      %p72 = por %p70, %p71
      %p74 = scmp.ne.s32.totalorder %s57, %s73
      %p75 = scmp.eq.s32.totalorder %s28, 0
      %p76 = por %p74, %p75
      %s78 = sadd.s32 %s77, 1
      %p81 = scmp.eq.s32.totalorder %s22, 1
      %p82 = scmp.ne.s32.totalorder %s77, %s79
      %p83 = scmp.eq.s32.totalorder %s22, 0
      %p84 = por %p82, %p83
      %p85 = scmp.ne.s32.totalorder %s77, %s79
      %p86 = scmp.eq.s32.totalorder %s27, 1
      %p87 = por %p85, %p86
      %p88 = scmp.ne.s32.totalorder %s79, %s80
      %p89 = scmp.eq.s32.totalorder %s27, 0
      %p90 = por %p88, %p89
      %p91 = scmp.ne.s32.totalorder %s79, %s80
      %p92 = scmp.eq.s32.totalorder %s28, 1
      %p93 = por %p91, %p92
      %p95 = scmp.ne.s32.totalorder %s80, %s94
      %p96 = scmp.eq.s32.totalorder %s28, 0
      %p97 = por %p95, %p96
      %s99 = sadd.s32 %s98, 1
      %p102 = scmp.eq.s32.totalorder %s22, 1
      %p103 = scmp.ne.s32.totalorder %s98, %s100
      %p104 = scmp.eq.s32.totalorder %s22, 0
      %p105 = por %p103, %p104
      %p106 = scmp.ne.s32.totalorder %s98, %s100
      %p107 = scmp.eq.s32.totalorder %s27, 1
      %p108 = por %p106, %p107
      %p109 = scmp.ne.s32.totalorder %s100, %s101
      %p110 = scmp.eq.s32.totalorder %s27, 0
      %p111 = por %p109, %p110
      %p112 = scmp.ne.s32.totalorder %s100, %s101
      %p113 = scmp.eq.s32.totalorder %s28, 1
      %p114 = por %p112, %p113
      %p116 = scmp.ne.s32.totalorder %s101, %s115
      %p117 = scmp.eq.s32.totalorder %s28, 0
      %p118 = por %p116, %p117
      %s120 = sadd.s32 %s119, 1
      %p123 = scmp.eq.s32.totalorder %s22, 1
      %p124 = scmp.ne.s32.totalorder %s119, %s121
      %p125 = scmp.eq.s32.totalorder %s22, 0
      %p126 = por %p124, %p125
      %p127 = scmp.ne.s32.totalorder %s119, %s121
      %p128 = scmp.eq.s32.totalorder %s27, 1
      %p129 = por %p127, %p128
      %p130 = scmp.ne.s32.totalorder %s121, %s122
      %p131 = scmp.eq.s32.totalorder %s27, 0
      %p132 = por %p130, %p131
      %p133 = scmp.ne.s32.totalorder %s121, %s122
      %p134 = scmp.eq.s32.totalorder %s28, 1
      %p135 = por %p133, %p134
      %p137 = scmp.ne.s32.totalorder %s122, %s136
      %p138 = scmp.eq.s32.totalorder %s28, 0
      %p139 = por %p137, %p138
      %s141 = sadd.s32 %s140, 1
      %p144 = scmp.eq.s32.totalorder %s22, 1
      %p145 = scmp.ne.s32.totalorder %s140, %s142
      %p146 = scmp.eq.s32.totalorder %s22, 0
      %p147 = por %p145, %p146
      %p148 = scmp.ne.s32.totalorder %s140, %s142
      %p149 = scmp.eq.s32.totalorder %s27, 1
      %p150 = por %p148, %p149
      %p151 = scmp.ne.s32.totalorder %s142, %s143
      %p152 = scmp.eq.s32.totalorder %s27, 0
      %p153 = por %p151, %p152
      %p154 = scmp.ne.s32.totalorder %s142, %s143
      %p155 = scmp.eq.s32.totalorder %s28, 1
      %p156 = por %p154, %p155
      %p158 = scmp.ne.s32.totalorder %s143, %s157
      %p159 = scmp.eq.s32.totalorder %s28, 0
      %p160 = por %p158, %p159
      %s162 = sadd.s32 %s161, 1
      %p165 = scmp.eq.s32.totalorder %s22, 1
      %p166 = scmp.ne.s32.totalorder %s161, %s163
      %p167 = scmp.eq.s32.totalorder %s22, 0
      %p168 = por %p166, %p167
      %p169 = scmp.ne.s32.totalorder %s161, %s163
      %p170 = scmp.eq.s32.totalorder %s27, 1
      %p171 = por %p169, %p170
      %p172 = scmp.ne.s32.totalorder %s163, %s164
      %p173 = scmp.eq.s32.totalorder %s27, 0
      %p174 = por %p172, %p173
      %p175 = scmp.ne.s32.totalorder %s163, %s164
      %p176 = scmp.eq.s32.totalorder %s28, 1
      %p177 = por %p175, %p176
      %p179 = scmp.ne.s32.totalorder %s164, %s178
      %p180 = scmp.eq.s32.totalorder %s28, 0
      %p181 = por %p179, %p180
      %s183 = sadd.s32 %s182, 1
      %p186 = scmp.eq.s32.totalorder %s22, 1
      %p187 = scmp.ne.s32.totalorder %s182, %s184
      %p188 = scmp.eq.s32.totalorder %s22, 0
      %p189 = por %p187, %p188
      %p190 = scmp.ne.s32.totalorder %s182, %s184
      %p191 = scmp.eq.s32.totalorder %s27, 1
      %p192 = por %p190, %p191
      %p193 = scmp.ne.s32.totalorder %s184, %s185
      %p194 = scmp.eq.s32.totalorder %s27, 0
      %p195 = por %p193, %p194
      %p196 = scmp.ne.s32.totalorder %s184, %s185
      %p197 = scmp.eq.s32.totalorder %s28, 1
      %p198 = por %p196, %p197
      %p200 = scmp.ne.s32.totalorder %s185, %s199
      %p201 = scmp.eq.s32.totalorder %s28, 0
      %p202 = por %p200, %p201
      %s203 = ssub.s32 %s22, %s29
      %p204 = scmp.eq.s32.totalorder %s203, 0
      %s206 = sadd.s32 %s205, 1
      %s207 = scalar_select %p204, %s205, %s206
      %p210 = pneg %p204
      %p211 = scmp.eq.s32.totalorder %s22, 1
      %p212 = por %p210, %p211
      %p213 = scmp.ne.s32.totalorder %s205, %s208
      %p214 = scmp.eq.s32.totalorder %s22, 0
      %p215 = por %p213, %p214
      %p216 = scmp.ne.s32.totalorder %s205, %s208
      %p217 = scmp.eq.s32.totalorder %s27, 1
      %p218 = por %p216, %p217
      %p219 = scmp.ne.s32.totalorder %s208, %s209
      %p220 = scmp.eq.s32.totalorder %s27, 0
      %p221 = por %p219, %p220
      %p222 = scmp.ne.s32.totalorder %s208, %s209
      %p223 = scmp.eq.s32.totalorder %s28, 1
      %p224 = por %p222, %p223
      %p226 = scmp.ne.s32.totalorder %s209, %s225
      %p227 = scmp.eq.s32.totalorder %s28, 0
      %p228 = por %p226, %p227
      %p229 = scmp.le.s32.totalorder 1, %s22
      %p230 = scmp.lt.s32.totalorder %s22, 3
      %p231 = pnand %p229, %p230
      %p232 = pneg %p231
      // Predicated region
      $region9: #{tpu_custom_call.1} parent=5 // pred_check
        _
      $region10: #{tpu_custom_call.1} parent=5 // pred_check_branch
        %234 = sbr.rel (%p231) target = $region12
      $region11: #{tpu_custom_call.1} parent=5 // pred_region
        %s235 = ssub.s32 %s22, 1
        // Predicated region
        $region13: #{tpu_custom_call.1} parent=11 // pred_check
          %p236 = pneg %p43
        $region14: #{tpu_custom_call.1} parent=11 // pred_check_branch
          %238 = sbr.rel (%p236) target = $region16
        $region15: #{tpu_custom_call.1} parent=11 // pred_region
          _
        $region16: #{tpu_custom_call.1} parent=11 // pred_fallthru
          _
        // Predicated region
        $region17: #{tpu_custom_call.1} parent=11 // pred_check
          %p239 = pneg %p90
        $region18: #{tpu_custom_call.1} parent=11 // pred_check_branch
          %241 = sbr.rel (%p239) target = $region20
        $region19: #{tpu_custom_call.1} parent=11 // pred_region
          %243 = vsyncadd [#allocation7], 0
          %s244 = sshll.u32 %s2, 4
          %s245 = int_to_ptr.hbm [resolvable:$true] %s244
          %s246 = sshll.u32 [#allocation6], 4
          %s247 = int_to_ptr.vmem [resolvable:$true] %s246
          %252 = dma.hbm_to_vmem [thread:$0]  %s245, 896, %s247, [#allocation7], 128, 128, 8
        $region20: #{tpu_custom_call.1} parent=11 // pred_fallthru
          _
        // Predicated region
        $region21: #{tpu_custom_call.1} parent=11 // pred_check
          %p253 = pneg %p111
        $region22: #{tpu_custom_call.1} parent=11 // pred_check_branch
          %255 = sbr.rel (%p253) target = $region24
        $region23: #{tpu_custom_call.1} parent=11 // pred_region
          _
        $region24: #{tpu_custom_call.1} parent=11 // pred_fallthru
          _
        // Predicated region
        $region25: #{tpu_custom_call.1} parent=11 // pred_check
          %p256 = pneg %p132
        $region26: #{tpu_custom_call.1} parent=11 // pred_check_branch
          %258 = sbr.rel (%p256) target = $region28
        $region27: #{tpu_custom_call.1} parent=11 // pred_region
          _
        $region28: #{tpu_custom_call.1} parent=11 // pred_fallthru
          _
        // Predicated region
        $region29: #{tpu_custom_call.1} parent=11 // pred_check
          %p259 = pneg %p153
        $region30: #{tpu_custom_call.1} parent=11 // pred_check_branch
          %261 = sbr.rel (%p259) target = $region32
        $region31: #{tpu_custom_call.1} parent=11 // pred_region
          _
        $region32: #{tpu_custom_call.1} parent=11 // pred_fallthru
          _
        // Predicated region
        $region33: #{tpu_custom_call.1} parent=11 // pred_check
          %p262 = pneg %p174
        $region34: #{tpu_custom_call.1} parent=11 // pred_check_branch
          %264 = sbr.rel (%p262) target = $region36
        $region35: #{tpu_custom_call.1} parent=11 // pred_region
          _
        $region36: #{tpu_custom_call.1} parent=11 // pred_fallthru
          _
        // Predicated region
        $region37: #{tpu_custom_call.1} parent=11 // pred_check
          %p265 = pneg %p195
        $region38: #{tpu_custom_call.1} parent=11 // pred_check_branch
          %267 = sbr.rel (%p265) target = $region40
        $region39: #{tpu_custom_call.1} parent=11 // pred_region
          _
        $region40: #{tpu_custom_call.1} parent=11 // pred_fallthru
          _
      $region12: #{tpu_custom_call.1} parent=5 // pred_fallthru
        _
      %p268 = scmp.lt.s32.totalorder %s22, 2
      // Predicated region
      $region41: #{tpu_custom_call.1} parent=5 // pred_check
        %p269 = pneg %p268
      $region42: #{tpu_custom_call.1} parent=5 // pred_check_branch
        %271 = sbr.rel (%p269) target = $region44
      $region43: #{tpu_custom_call.1} parent=5 // pred_region
        // Predicated region
        $region45: #{tpu_custom_call.1} parent=43 // pred_check
          %p272 = pneg %p63
        $region46: #{tpu_custom_call.1} parent=43 // pred_check_branch
          %274 = sbr.rel (%p272) target = $region48
        $region47: #{tpu_custom_call.1} parent=43 // pred_region
          %s275 = sand.u32 %s53, 1
          %s276 = scalar_lea.sflag [#allocation4], %s275
          %s277 = sand.u32 %s53, 1
          %s278 = smul.addr %s277, 128
          %s279 = scalar_lea.vmem [#allocation3], %s278
          %281 = vsyncadd %s276, 0
          %s282 = smul.addr %s22, 16
          %s283 = smul.addr %s282, 8
          %s284 = scalar_lea.hbm %s1, %s283
          %s285 = sshll.u32 %s284, 4
          %s286 = int_to_ptr.hbm [resolvable:$true] %s285
          %s287 = sshll.u32 %s279, 4
          %s288 = int_to_ptr.vmem [resolvable:$true] %s287
          %293 = dma.hbm_to_vmem [thread:$0]  %s286, 2048, %s288, %s276, 256, 256, 16
        $region48: #{tpu_custom_call.1} parent=43 // pred_fallthru
          _
      $region44: #{tpu_custom_call.1} parent=5 // pred_fallthru
        _
      %p294 = scmp.le.s32.totalorder 1, %s22
      %p295 = scmp.lt.s32.totalorder %s22, 3
      %p296 = pnand %p294, %p295
      %p297 = pneg %p296
      // Predicated region
      $region49: #{tpu_custom_call.1} parent=5 // pred_check
        _
      $region50: #{tpu_custom_call.1} parent=5 // pred_check_branch
        %299 = sbr.rel (%p296) target = $region52
      $region51: #{tpu_custom_call.1} parent=5 // pred_region
        %s300 = ssub.s32 %s22, 1
        %s301 = sand.u32 %s56, 1
        %s302 = scalar_lea.sflag [#allocation4], %s301
        %s303 = sand.u32 %s56, 1
        %s304 = smul.addr %s303, 128
        %s305 = scalar_lea.vmem [#allocation3], %s304
        // Predicated region
        $region53: #{tpu_custom_call.1} parent=51 // pred_check
          %p306 = pneg %p69
        $region54: #{tpu_custom_call.1} parent=51 // pred_check_branch
          %308 = sbr.rel (%p306) target = $region56
        $region55: #{tpu_custom_call.1} parent=51 // pred_region
          %310 = dma.done %s302, 2048
        $region56: #{tpu_custom_call.1} parent=51 // pred_fallthru
          _
        // Predicated region
        $region57: #{tpu_custom_call.1} parent=51 // pred_check
          %p311 = pneg %p90
        $region58: #{tpu_custom_call.1} parent=51 // pred_check_branch
          %313 = sbr.rel (%p311) target = $region60
        $region59: #{tpu_custom_call.1} parent=51 // pred_region
          %315 = dma.done [#allocation7], 896
        $region60: #{tpu_custom_call.1} parent=51 // pred_fallthru
          _
        %p316 = pneg %p43
        %p317 = pneg %p40
        %s318 = sand.u32 %s56, 1
        %s319 = scalar_lea.sflag [#allocation4], %s318
        %s320 = sand.u32 %s56, 1
        %s321 = smul.addr %s320, 128
        %s322 = scalar_lea.vmem [#allocation3], %s321
        %p323 = pneg %p69
        %p324 = pneg %p66
        %p325 = pneg %p90
        %p326 = pneg %p87
        %p327 = pneg %p111
        %p328 = pneg %p108
        %p329 = pneg %p132
        %p330 = pneg %p129
        %p331 = pneg %p153
        %p332 = pneg %p150
        %p333 = pneg %p174
        %p334 = pneg %p171
        %p335 = pneg %p195
        %p336 = pneg %p192
        %p337 = pneg %p221
        %p338 = pneg %p218
        %s339 = sand.u32 %s208, 1
        %s340 = scalar_lea.sflag [#allocation5], %s339
        %s341 = sand.u32 %s208, 1
        %s342 = smul.addr %s341, 128
        %s343 = scalar_lea.vmem [#allocation8], %s342
        %s344 = sld [smem:[#allocation2]]
        %v345 = vld [vmem:[#allocation6] sm:$0xff]
        %v346 = vld [vmem:[#allocation6 + $0x8] sm:$0xff]
        %v347 = vld [vmem:[#allocation6 + $0x10] sm:$0xff]
        %v348 = vld [vmem:[#allocation6 + $0x18] sm:$0xff]
        %v349 = vld [vmem:[#allocation6 + $0x20] sm:$0xff]
        %v350 = vld [vmem:[#allocation6 + $0x28] sm:$0xff]
        %v351 = vld [vmem:[#allocation6 + $0x30] sm:$0xff]
        %v352 = vld [vmem:[%s3] sm:$0xff]
        %v353 = vld [vmem:[%s3 + $0x8] sm:$0xff]
        %v354 = vld [vmem:[%s3 + $0x10] sm:$0xff]
        %v355 = vld [vmem:[%s3 + $0x18] sm:$0xff]
        %v356 = vld [vmem:[%s3 + $0x20] sm:$0xff]
        %v357 = vld [vmem:[%s3 + $0x28] sm:$0xff]
        %v358 = vld [vmem:[%s3 + $0x30] sm:$0xff]
        %v359 = vld [vmem:[%s3 + $0x38] sm:$0xff]
        %v360 = vld [vmem:[%s3 + $0x40] sm:$0xff]
        %v361 = vld [vmem:[%s3 + $0x48] sm:$0xff]
        %v362 = vld [vmem:[%s3 + $0x50] sm:$0xff]
        %v363 = vld [vmem:[%s3 + $0x58] sm:$0xff]
        %v364 = vld [vmem:[%s3 + $0x60] sm:$0xff]
        %v365 = vld [vmem:[%s3 + $0x68] sm:$0xff]
        %v366 = vld [vmem:[%s4] sm:$0xf]
        %v367 = vld [vmem:[%s5] sm:$0xf]
        %v368 = vld [vmem:[%s6] sm:$0xff]
        %v369 = vld [vmem:[%s6 + $0x8] sm:$0xff]
        %v370 = vld [vmem:[%s6 + $0x10] sm:$0xff]
        %v371 = vld [vmem:[%s6 + $0x18] sm:$0xff]
        %v372 = vld [vmem:[%s6 + $0x20] sm:$0xff]
        %v373 = vld [vmem:[%s6 + $0x28] sm:$0xff]
        %v374 = vld [vmem:[%s6 + $0x30] sm:$0xff]
        %v375 = vld [vmem:[%s6 + $0x38] sm:$0xff]
        %v376 = vld [vmem:[%s7] sm:$0xff]
        %v377 = vld [vmem:[%s7 + $0x8] sm:$0xff]
        %v378 = vld [vmem:[%s7 + $0x10] sm:$0xff]
        %v379 = vld [vmem:[%s7 + $0x18] sm:$0xff]
        %v380 = vld [vmem:[%s7 + $0x20] sm:$0xff]
        %v381 = vld [vmem:[%s7 + $0x28] sm:$0xff]
        %v382 = vld [vmem:[%s7 + $0x30] sm:$0xff]
        %v383 = vld [vmem:[%s7 + $0x38] sm:$0xff]
        %v384 = vld [vmem:[%s305] sm:$0xff]
        %v385 = vld [vmem:[%s305 + $0x8] sm:$0xff]
        %v386 = vld [vmem:[%s305 + $0x10] sm:$0xff]
        %v387 = vld [vmem:[%s305 + $0x18] sm:$0xff]
        %v388 = vld [vmem:[%s305 + $0x20] sm:$0xff]
        %v389 = vld [vmem:[%s305 + $0x28] sm:$0xff]
        %v390 = vld [vmem:[%s305 + $0x30] sm:$0xff]
        %v391 = vld [vmem:[%s305 + $0x38] sm:$0xff]
        %v392 = vld [vmem:[%s305 + $0x40] sm:$0xff]
        %v393 = vld [vmem:[%s305 + $0x48] sm:$0xff]
        %v394 = vld [vmem:[%s305 + $0x50] sm:$0xff]
        %v395 = vld [vmem:[%s305 + $0x58] sm:$0xff]
        %v396 = vld [vmem:[%s305 + $0x60] sm:$0xff]
        %v397 = vld [vmem:[%s305 + $0x68] sm:$0xff]
        %v398 = vld [vmem:[%s305 + $0x70] sm:$0xff]
        %v399 = vld [vmem:[%s305 + $0x78] sm:$0xff]
        %vm400 = vcmask 523264
        %v402 = vsel %vm400, %v345, 0
        %v405 = vsel %vm400, %v346, 0
        %v408 = vsel %vm400, %v347, 0
        %v411 = vsel %vm400, %v348, 0
        %v414 = vsel %vm400, %v349, 0
        %v417 = vsel %vm400, %v350, 0
        %v420 = vsel %vm400, %v351, 0
        %422 = vmatpush.msra.mxu0 0.0
        %423 = vmatpush.msra.mxu0 0.0
        %424 = vmatpush.msra.mxu0 0.0
        %425 = vmatpush.msra.mxu0 0.0
        %426 = vmatpush.msra.mxu0 0.0
        %427 = vmatpush.msra.mxu0 0.0
        %428 = vmatpush.msra.mxu0 0.0
        %429 = vmatpush.msra.mxu0 0.0
        %v430 = vand.u32 %v398, 4294901760
        %431 = vmatpush.msra.mxu0 %v430
        %v432 = vand.u32 %v396, 4294901760
        %433 = vmatpush.msra.mxu0 %v432
        %v434 = vand.u32 %v394, 4294901760
        %435 = vmatpush.msra.mxu0 %v434
        %v436 = vand.u32 %v392, 4294901760
        %437 = vmatpush.msra.mxu0 %v436
        %v438 = vand.u32 %v390, 4294901760
        %439 = vmatpush.msra.mxu0 %v438
        %v440 = vand.u32 %v388, 4294901760
        %441 = vmatpush.msra.mxu0 %v440
        %v442 = vand.u32 %v386, 4294901760
        %443 = vmatpush.msra.mxu0 %v442
        %v444 = vand.u32 %v384, 4294901760
        %445 = vmatpush.msra.mxu0 %v444
        %v446 = vand.u32 %v402, 4294901760
        %v447 = vsub.f32 %v402, %v446
        %v448 = vand.u32 %v447, 4294901760
        %v449 = vsub.f32 %v447, %v448
        %v450 = vand.u32 %v449, 4294901760
        %451 = vmatmul.f32.gmra.mxu0 %v450
        %v452 = vpop.f32.mrf.mxu0
        %v453 = vadd.f32 0.0, %v452
        %v454 = vand.u32 %v405, 4294901760
        %v455 = vsub.f32 %v405, %v454
        %v456 = vand.u32 %v455, 4294901760
        %v457 = vsub.f32 %v455, %v456
        %v458 = vand.u32 %v457, 4294901760
        %459 = vmatmul.f32.gmra.mxu0 %v458
        %v460 = vpop.f32.mrf.mxu0
        %v461 = vadd.f32 0.0, %v460
        %v462 = vand.u32 %v408, 4294901760
        %v463 = vsub.f32 %v408, %v462
        %v464 = vand.u32 %v463, 4294901760
        %v465 = vsub.f32 %v463, %v464
        %v466 = vand.u32 %v465, 4294901760
        %467 = vmatmul.f32.gmra.mxu0 %v466
        %v468 = vpop.f32.mrf.mxu0
        %v469 = vadd.f32 0.0, %v468
        %v470 = vand.u32 %v411, 4294901760
        %v471 = vsub.f32 %v411, %v470
        %v472 = vand.u32 %v471, 4294901760
        %v473 = vsub.f32 %v471, %v472
        %v474 = vand.u32 %v473, 4294901760
        %475 = vmatmul.f32.gmra.mxu0 %v474
        %v476 = vpop.f32.mrf.mxu0
        %v477 = vadd.f32 0.0, %v476
        %v478 = vand.u32 %v414, 4294901760
        %v479 = vsub.f32 %v414, %v478
        %v480 = vand.u32 %v479, 4294901760
        %v481 = vsub.f32 %v479, %v480
        %v482 = vand.u32 %v481, 4294901760
        %483 = vmatmul.f32.gmra.mxu0 %v482
        %v484 = vpop.f32.mrf.mxu0
        %v485 = vadd.f32 0.0, %v484
        %v486 = vand.u32 %v417, 4294901760
        %v487 = vsub.f32 %v417, %v486
        %v488 = vand.u32 %v487, 4294901760
        %v489 = vsub.f32 %v487, %v488
        %v490 = vand.u32 %v489, 4294901760
        %491 = vmatmul.f32.gmra.mxu0 %v490
        %v492 = vpop.f32.mrf.mxu0
        %v493 = vadd.f32 0.0, %v492
        %v494 = vand.u32 %v420, 4294901760
        %v495 = vsub.f32 %v420, %v494
        %v496 = vand.u32 %v495, 4294901760
        %v497 = vsub.f32 %v495, %v496
        %v498 = vand.u32 %v497, 4294901760
        %499 = vmatmul.f32.gmra.mxu0 %v498
        %v500 = vpop.f32.mrf.mxu0
        %v501 = vadd.f32 0.0, %v500
        %502 = vdwg.mxu0
        %503 = vmatpush.msra.mxu0 0.0
        %504 = vmatpush.msra.mxu0 0.0
        %505 = vmatpush.msra.mxu0 0.0
        %506 = vmatpush.msra.mxu0 0.0
        %507 = vmatpush.msra.mxu0 0.0
        %508 = vmatpush.msra.mxu0 0.0
        %509 = vmatpush.msra.mxu0 0.0
        %510 = vmatpush.msra.mxu0 0.0
        %v511 = vand.u32 %v398, 4294901760
        %v512 = vsub.f32 %v398, %v511
        %v513 = vand.u32 %v512, 4294901760
        %v514 = vsub.f32 %v512, %v513
        %v515 = vand.u32 %v514, 4294901760
        %516 = vmatpush.msra.mxu0 %v515
        %v517 = vand.u32 %v396, 4294901760
        %v518 = vsub.f32 %v396, %v517
        %v519 = vand.u32 %v518, 4294901760
        %v520 = vsub.f32 %v518, %v519
        %v521 = vand.u32 %v520, 4294901760
        %522 = vmatpush.msra.mxu0 %v521
        %v523 = vand.u32 %v394, 4294901760
        %v524 = vsub.f32 %v394, %v523
        %v525 = vand.u32 %v524, 4294901760
        %v526 = vsub.f32 %v524, %v525
        %v527 = vand.u32 %v526, 4294901760
        %528 = vmatpush.msra.mxu0 %v527
        %v529 = vand.u32 %v392, 4294901760
        %v530 = vsub.f32 %v392, %v529
        %v531 = vand.u32 %v530, 4294901760
        %v532 = vsub.f32 %v530, %v531
        %v533 = vand.u32 %v532, 4294901760
        %534 = vmatpush.msra.mxu0 %v533
        %v535 = vand.u32 %v390, 4294901760
        %v536 = vsub.f32 %v390, %v535
        %v537 = vand.u32 %v536, 4294901760
        %v538 = vsub.f32 %v536, %v537
        %v539 = vand.u32 %v538, 4294901760
        %540 = vmatpush.msra.mxu0 %v539
        %v541 = vand.u32 %v388, 4294901760
        %v542 = vsub.f32 %v388, %v541
        %v543 = vand.u32 %v542, 4294901760
        %v544 = vsub.f32 %v542, %v543
        %v545 = vand.u32 %v544, 4294901760
        %546 = vmatpush.msra.mxu0 %v545
        %v547 = vand.u32 %v386, 4294901760
        %v548 = vsub.f32 %v386, %v547
        %v549 = vand.u32 %v548, 4294901760
        %v550 = vsub.f32 %v548, %v549
        %v551 = vand.u32 %v550, 4294901760
        %552 = vmatpush.msra.mxu0 %v551
        %v553 = vand.u32 %v384, 4294901760
        %v554 = vsub.f32 %v384, %v553
        %v555 = vand.u32 %v554, 4294901760
        %v556 = vsub.f32 %v554, %v555
        %v557 = vand.u32 %v556, 4294901760
        %558 = vmatpush.msra.mxu0 %v557
        %v559 = vand.u32 %v402, 4294901760
        %560 = vmatmul.f32.gmra.mxu0 %v559
        %v561 = vpop.f32.mrf.mxu0
        %v562 = vadd.f32 %v453, %v561
        %v563 = vand.u32 %v405, 4294901760
        %564 = vmatmul.f32.gmra.mxu0 %v563
        %v565 = vpop.f32.mrf.mxu0
        %v566 = vadd.f32 %v461, %v565
        %v567 = vand.u32 %v408, 4294901760
        %568 = vmatmul.f32.gmra.mxu0 %v567
        %v569 = vpop.f32.mrf.mxu0
        %v570 = vadd.f32 %v469, %v569
        %v571 = vand.u32 %v411, 4294901760
        %572 = vmatmul.f32.gmra.mxu0 %v571
        %v573 = vpop.f32.mrf.mxu0
        %v574 = vadd.f32 %v477, %v573
        %v575 = vand.u32 %v414, 4294901760
        %576 = vmatmul.f32.gmra.mxu0 %v575
        %v577 = vpop.f32.mrf.mxu0
        %v578 = vadd.f32 %v485, %v577
        %v579 = vand.u32 %v417, 4294901760
        %580 = vmatmul.f32.gmra.mxu0 %v579
        %v581 = vpop.f32.mrf.mxu0
        %v582 = vadd.f32 %v493, %v581
        %v583 = vand.u32 %v420, 4294901760
        %584 = vmatmul.f32.gmra.mxu0 %v583
        %v585 = vpop.f32.mrf.mxu0
        %v586 = vadd.f32 %v501, %v585
        %587 = vdwg.mxu0
        %588 = vmatpush.msra.mxu0 0.0
        %589 = vmatpush.msra.mxu0 0.0
        %590 = vmatpush.msra.mxu0 0.0
        %591 = vmatpush.msra.mxu0 0.0
        %592 = vmatpush.msra.mxu0 0.0
        %593 = vmatpush.msra.mxu0 0.0
        %594 = vmatpush.msra.mxu0 0.0
        %595 = vmatpush.msra.mxu0 0.0
        %v596 = vand.u32 %v398, 4294901760
        %v597 = vsub.f32 %v398, %v596
        %598 = vmatpush.msra.mxu0 %v597
        %v599 = vand.u32 %v396, 4294901760
        %v600 = vsub.f32 %v396, %v599
        %601 = vmatpush.msra.mxu0 %v600
        %v602 = vand.u32 %v394, 4294901760
        %v603 = vsub.f32 %v394, %v602
        %604 = vmatpush.msra.mxu0 %v603
        %v605 = vand.u32 %v392, 4294901760
        %v606 = vsub.f32 %v392, %v605
        %607 = vmatpush.msra.mxu0 %v606
        %v608 = vand.u32 %v390, 4294901760
        %v609 = vsub.f32 %v390, %v608
        %610 = vmatpush.msra.mxu0 %v609
        %v611 = vand.u32 %v388, 4294901760
        %v612 = vsub.f32 %v388, %v611
        %613 = vmatpush.msra.mxu0 %v612
        %v614 = vand.u32 %v386, 4294901760
        %v615 = vsub.f32 %v386, %v614
        %616 = vmatpush.msra.mxu0 %v615
        %v617 = vand.u32 %v384, 4294901760
        %v618 = vsub.f32 %v384, %v617
        %619 = vmatpush.msra.mxu0 %v618
        %v620 = vand.u32 %v402, 4294901760
        %v621 = vsub.f32 %v402, %v620
        %622 = vmatmul.f32.gmra.mxu0 %v621
        %v623 = vpop.f32.mrf.mxu0
        %v624 = vadd.f32 %v562, %v623
        %v625 = vand.u32 %v405, 4294901760
        %v626 = vsub.f32 %v405, %v625
        %627 = vmatmul.f32.gmra.mxu0 %v626
        %v628 = vpop.f32.mrf.mxu0
        %v629 = vadd.f32 %v566, %v628
        %v630 = vand.u32 %v408, 4294901760
        %v631 = vsub.f32 %v408, %v630
        %632 = vmatmul.f32.gmra.mxu0 %v631
        %v633 = vpop.f32.mrf.mxu0
        %v634 = vadd.f32 %v570, %v633
        %v635 = vand.u32 %v411, 4294901760
        %v636 = vsub.f32 %v411, %v635
        %637 = vmatmul.f32.gmra.mxu0 %v636
        %v638 = vpop.f32.mrf.mxu0
        %v639 = vadd.f32 %v574, %v638
        %v640 = vand.u32 %v414, 4294901760
        %v641 = vsub.f32 %v414, %v640
        %642 = vmatmul.f32.gmra.mxu0 %v641
        %v643 = vpop.f32.mrf.mxu0
        %v644 = vadd.f32 %v578, %v643
        %v645 = vand.u32 %v417, 4294901760
        %v646 = vsub.f32 %v417, %v645
        %647 = vmatmul.f32.gmra.mxu0 %v646
        %v648 = vpop.f32.mrf.mxu0
        %v649 = vadd.f32 %v582, %v648
        %v650 = vand.u32 %v420, 4294901760
        %v651 = vsub.f32 %v420, %v650
        %652 = vmatmul.f32.gmra.mxu0 %v651
        %v653 = vpop.f32.mrf.mxu0
        %v654 = vadd.f32 %v586, %v653
        %655 = vdwg.mxu0
        %656 = vmatpush.msra.mxu0 0.0
        %657 = vmatpush.msra.mxu0 0.0
        %658 = vmatpush.msra.mxu0 0.0
        %659 = vmatpush.msra.mxu0 0.0
        %660 = vmatpush.msra.mxu0 0.0
        %661 = vmatpush.msra.mxu0 0.0
        %662 = vmatpush.msra.mxu0 0.0
        %663 = vmatpush.msra.mxu0 0.0
        %v664 = vand.u32 %v398, 4294901760
        %665 = vmatpush.msra.mxu0 %v664
        %v666 = vand.u32 %v396, 4294901760
        %667 = vmatpush.msra.mxu0 %v666
        %v668 = vand.u32 %v394, 4294901760
        %669 = vmatpush.msra.mxu0 %v668
        %v670 = vand.u32 %v392, 4294901760
        %671 = vmatpush.msra.mxu0 %v670
        %v672 = vand.u32 %v390, 4294901760
        %673 = vmatpush.msra.mxu0 %v672
        %v674 = vand.u32 %v388, 4294901760
        %675 = vmatpush.msra.mxu0 %v674
        %v676 = vand.u32 %v386, 4294901760
        %677 = vmatpush.msra.mxu0 %v676
        %v678 = vand.u32 %v384, 4294901760
        %679 = vmatpush.msra.mxu0 %v678
        %v680 = vand.u32 %v402, 4294901760
        %v681 = vsub.f32 %v402, %v680
        %v682 = vand.u32 %v681, 4294901760
        %683 = vmatmul.f32.gmra.mxu0 %v682
        %v684 = vpop.f32.mrf.mxu0
        %v685 = vadd.f32 %v624, %v684
        %v686 = vand.u32 %v405, 4294901760
        %v687 = vsub.f32 %v405, %v686
        %v688 = vand.u32 %v687, 4294901760
        %689 = vmatmul.f32.gmra.mxu0 %v688
        %v690 = vpop.f32.mrf.mxu0
        %v691 = vadd.f32 %v629, %v690
        %v692 = vand.u32 %v408, 4294901760
        %v693 = vsub.f32 %v408, %v692
        %v694 = vand.u32 %v693, 4294901760
        %695 = vmatmul.f32.gmra.mxu0 %v694
        %v696 = vpop.f32.mrf.mxu0
        %v697 = vadd.f32 %v634, %v696
        %v698 = vand.u32 %v411, 4294901760
        %v699 = vsub.f32 %v411, %v698
        %v700 = vand.u32 %v699, 4294901760
        %701 = vmatmul.f32.gmra.mxu0 %v700
        %v702 = vpop.f32.mrf.mxu0
        %v703 = vadd.f32 %v639, %v702
        %v704 = vand.u32 %v414, 4294901760
        %v705 = vsub.f32 %v414, %v704
        %v706 = vand.u32 %v705, 4294901760
        %707 = vmatmul.f32.gmra.mxu0 %v706
        %v708 = vpop.f32.mrf.mxu0
        %v709 = vadd.f32 %v644, %v708
        %v710 = vand.u32 %v417, 4294901760
        %v711 = vsub.f32 %v417, %v710
        %v712 = vand.u32 %v711, 4294901760
        %713 = vmatmul.f32.gmra.mxu0 %v712
        %v714 = vpop.f32.mrf.mxu0
        %v715 = vadd.f32 %v649, %v714
        %v716 = vand.u32 %v420, 4294901760
        %v717 = vsub.f32 %v420, %v716
        %v718 = vand.u32 %v717, 4294901760
        %719 = vmatmul.f32.gmra.mxu0 %v718
        %v720 = vpop.f32.mrf.mxu0
        %v721 = vadd.f32 %v654, %v720
        %722 = vdwg.mxu0
        %723 = vmatpush.msra.mxu0 0.0
        %724 = vmatpush.msra.mxu0 0.0
        %725 = vmatpush.msra.mxu0 0.0
        %726 = vmatpush.msra.mxu0 0.0
        %727 = vmatpush.msra.mxu0 0.0
        %728 = vmatpush.msra.mxu0 0.0
        %729 = vmatpush.msra.mxu0 0.0
        %730 = vmatpush.msra.mxu0 0.0
        %v731 = vand.u32 %v398, 4294901760
        %v732 = vsub.f32 %v398, %v731
        %v733 = vand.u32 %v732, 4294901760
        %734 = vmatpush.msra.mxu0 %v733
        %v735 = vand.u32 %v396, 4294901760
        %v736 = vsub.f32 %v396, %v735
        %v737 = vand.u32 %v736, 4294901760
        %738 = vmatpush.msra.mxu0 %v737
        %v739 = vand.u32 %v394, 4294901760
        %v740 = vsub.f32 %v394, %v739
        %v741 = vand.u32 %v740, 4294901760
        %742 = vmatpush.msra.mxu0 %v741
        %v743 = vand.u32 %v392, 4294901760
        %v744 = vsub.f32 %v392, %v743
        %v745 = vand.u32 %v744, 4294901760
        %746 = vmatpush.msra.mxu0 %v745
        %v747 = vand.u32 %v390, 4294901760
        %v748 = vsub.f32 %v390, %v747
        %v749 = vand.u32 %v748, 4294901760
        %750 = vmatpush.msra.mxu0 %v749
        %v751 = vand.u32 %v388, 4294901760
        %v752 = vsub.f32 %v388, %v751
        %v753 = vand.u32 %v752, 4294901760
        %754 = vmatpush.msra.mxu0 %v753
        %v755 = vand.u32 %v386, 4294901760
        %v756 = vsub.f32 %v386, %v755
        %v757 = vand.u32 %v756, 4294901760
        %758 = vmatpush.msra.mxu0 %v757
        %v759 = vand.u32 %v384, 4294901760
        %v760 = vsub.f32 %v384, %v759
        %v761 = vand.u32 %v760, 4294901760
        %762 = vmatpush.msra.mxu0 %v761
        %v763 = vand.u32 %v402, 4294901760
        %764 = vmatmul.f32.gmra.mxu0 %v763
        %v765 = vpop.f32.mrf.mxu0
        %v766 = vadd.f32 %v685, %v765
        %v767 = vand.u32 %v405, 4294901760
        %768 = vmatmul.f32.gmra.mxu0 %v767
        %v769 = vpop.f32.mrf.mxu0
        %v770 = vadd.f32 %v691, %v769
        %v771 = vand.u32 %v408, 4294901760
        %772 = vmatmul.f32.gmra.mxu0 %v771
        %v773 = vpop.f32.mrf.mxu0
        %v774 = vadd.f32 %v697, %v773
        %v775 = vand.u32 %v411, 4294901760
        %776 = vmatmul.f32.gmra.mxu0 %v775
        %v777 = vpop.f32.mrf.mxu0
        %v778 = vadd.f32 %v703, %v777
        %v779 = vand.u32 %v414, 4294901760
        %780 = vmatmul.f32.gmra.mxu0 %v779
        %v781 = vpop.f32.mrf.mxu0
        %v782 = vadd.f32 %v709, %v781
        %v783 = vand.u32 %v417, 4294901760
        %784 = vmatmul.f32.gmra.mxu0 %v783
        %v785 = vpop.f32.mrf.mxu0
        %v786 = vadd.f32 %v715, %v785
        %v787 = vand.u32 %v420, 4294901760
        %788 = vmatmul.f32.gmra.mxu0 %v787
        %v789 = vpop.f32.mrf.mxu0
        %v790 = vadd.f32 %v721, %v789
        %791 = vdwg.mxu0
        %792 = vmatpush.msra.mxu0 0.0
        %793 = vmatpush.msra.mxu0 0.0
        %794 = vmatpush.msra.mxu0 0.0
        %795 = vmatpush.msra.mxu0 0.0
        %796 = vmatpush.msra.mxu0 0.0
        %797 = vmatpush.msra.mxu0 0.0
        %798 = vmatpush.msra.mxu0 0.0
        %799 = vmatpush.msra.mxu0 0.0
        %v800 = vand.u32 %v398, 4294901760
        %801 = vmatpush.msra.mxu0 %v800
        %v802 = vand.u32 %v396, 4294901760
        %803 = vmatpush.msra.mxu0 %v802
        %v804 = vand.u32 %v394, 4294901760
        %805 = vmatpush.msra.mxu0 %v804
        %v806 = vand.u32 %v392, 4294901760
        %807 = vmatpush.msra.mxu0 %v806
        %v808 = vand.u32 %v390, 4294901760
        %809 = vmatpush.msra.mxu0 %v808
        %v810 = vand.u32 %v388, 4294901760
        %811 = vmatpush.msra.mxu0 %v810
        %v812 = vand.u32 %v386, 4294901760
        %813 = vmatpush.msra.mxu0 %v812
        %v814 = vand.u32 %v384, 4294901760
        %815 = vmatpush.msra.mxu0 %v814
        %v816 = vand.u32 %v402, 4294901760
        %817 = vmatmul.f32.gmra.mxu0 %v816
        %v818 = vpop.f32.mrf.mxu0
        %v819 = vadd.f32 %v766, %v818
        %v820 = vand.u32 %v405, 4294901760
        %821 = vmatmul.f32.gmra.mxu0 %v820
        %v822 = vpop.f32.mrf.mxu0
        %v823 = vadd.f32 %v770, %v822
        %v824 = vand.u32 %v408, 4294901760
        %825 = vmatmul.f32.gmra.mxu0 %v824
        %v826 = vpop.f32.mrf.mxu0
        %v827 = vadd.f32 %v774, %v826
        %v828 = vand.u32 %v411, 4294901760
        %829 = vmatmul.f32.gmra.mxu0 %v828
        %v830 = vpop.f32.mrf.mxu0
        %v831 = vadd.f32 %v778, %v830
        %v832 = vand.u32 %v414, 4294901760
        %833 = vmatmul.f32.gmra.mxu0 %v832
        %v834 = vpop.f32.mrf.mxu0
        %v835 = vadd.f32 %v782, %v834
        %v836 = vand.u32 %v417, 4294901760
        %837 = vmatmul.f32.gmra.mxu0 %v836
        %v838 = vpop.f32.mrf.mxu0
        %v839 = vadd.f32 %v786, %v838
        %v840 = vand.u32 %v420, 4294901760
        %841 = vmatmul.f32.gmra.mxu0 %v840
        %v842 = vpop.f32.mrf.mxu0
        %v843 = vadd.f32 %v790, %v842
        %844 = vdwg.mxu0
        %845 = vmatpush.msra.mxu0 0.0
        %846 = vmatpush.msra.mxu0 0.0
        %847 = vmatpush.msra.mxu0 0.0
        %848 = vmatpush.msra.mxu0 0.0
        %849 = vmatpush.msra.mxu0 0.0
        %850 = vmatpush.msra.mxu0 0.0
        %851 = vmatpush.msra.mxu0 0.0
        %852 = vmatpush.msra.mxu0 0.0
        %v853 = vand.u32 %v399, 4294901760
        %854 = vmatpush.msra.mxu0 %v853
        %v855 = vand.u32 %v397, 4294901760
        %856 = vmatpush.msra.mxu0 %v855
        %v857 = vand.u32 %v395, 4294901760
        %858 = vmatpush.msra.mxu0 %v857
        %v859 = vand.u32 %v393, 4294901760
        %860 = vmatpush.msra.mxu0 %v859
        %v861 = vand.u32 %v391, 4294901760
        %862 = vmatpush.msra.mxu0 %v861
        %v863 = vand.u32 %v389, 4294901760
        %864 = vmatpush.msra.mxu0 %v863
        %v865 = vand.u32 %v387, 4294901760
        %866 = vmatpush.msra.mxu0 %v865
        %v867 = vand.u32 %v385, 4294901760
        %868 = vmatpush.msra.mxu0 %v867
        %v869 = vand.u32 %v402, 4294901760
        %v870 = vsub.f32 %v402, %v869
        %v871 = vand.u32 %v870, 4294901760
        %v872 = vsub.f32 %v870, %v871
        %v873 = vand.u32 %v872, 4294901760
        %874 = vmatmul.f32.gmra.mxu0 %v873
        %v875 = vpop.f32.mrf.mxu0
        %v876 = vadd.f32 0.0, %v875
        %v877 = vand.u32 %v405, 4294901760
        %v878 = vsub.f32 %v405, %v877
        %v879 = vand.u32 %v878, 4294901760
        %v880 = vsub.f32 %v878, %v879
        %v881 = vand.u32 %v880, 4294901760
        %882 = vmatmul.f32.gmra.mxu0 %v881
        %v883 = vpop.f32.mrf.mxu0
        %v884 = vadd.f32 0.0, %v883
        %v885 = vand.u32 %v408, 4294901760
        %v886 = vsub.f32 %v408, %v885
        %v887 = vand.u32 %v886, 4294901760
        %v888 = vsub.f32 %v886, %v887
        %v889 = vand.u32 %v888, 4294901760
        %890 = vmatmul.f32.gmra.mxu0 %v889
        %v891 = vpop.f32.mrf.mxu0
        %v892 = vadd.f32 0.0, %v891
        %v893 = vand.u32 %v411, 4294901760
        %v894 = vsub.f32 %v411, %v893
        %v895 = vand.u32 %v894, 4294901760
        %v896 = vsub.f32 %v894, %v895
        %v897 = vand.u32 %v896, 4294901760
        %898 = vmatmul.f32.gmra.mxu0 %v897
        %v899 = vpop.f32.mrf.mxu0
        %v900 = vadd.f32 0.0, %v899
        %v901 = vand.u32 %v414, 4294901760
        %v902 = vsub.f32 %v414, %v901
        %v903 = vand.u32 %v902, 4294901760
        %v904 = vsub.f32 %v902, %v903
        %v905 = vand.u32 %v904, 4294901760
        %906 = vmatmul.f32.gmra.mxu0 %v905
        %v907 = vpop.f32.mrf.mxu0
        %v908 = vadd.f32 0.0, %v907
        %v909 = vand.u32 %v417, 4294901760
        %v910 = vsub.f32 %v417, %v909
        %v911 = vand.u32 %v910, 4294901760
        %v912 = vsub.f32 %v910, %v911
        %v913 = vand.u32 %v912, 4294901760
        %914 = vmatmul.f32.gmra.mxu0 %v913
        %v915 = vpop.f32.mrf.mxu0
        %v916 = vadd.f32 0.0, %v915
        %v917 = vand.u32 %v420, 4294901760
        %v918 = vsub.f32 %v420, %v917
        %v919 = vand.u32 %v918, 4294901760
        %v920 = vsub.f32 %v918, %v919
        %v921 = vand.u32 %v920, 4294901760
        %922 = vmatmul.f32.gmra.mxu0 %v921
        %v923 = vpop.f32.mrf.mxu0
        %v924 = vadd.f32 0.0, %v923
        %925 = vdwg.mxu0
        %926 = vmatpush.msra.mxu0 0.0
        %927 = vmatpush.msra.mxu0 0.0
        %928 = vmatpush.msra.mxu0 0.0
        %929 = vmatpush.msra.mxu0 0.0
        %930 = vmatpush.msra.mxu0 0.0
        %931 = vmatpush.msra.mxu0 0.0
        %932 = vmatpush.msra.mxu0 0.0
        %933 = vmatpush.msra.mxu0 0.0
        %v934 = vand.u32 %v399, 4294901760
        %v935 = vsub.f32 %v399, %v934
        %v936 = vand.u32 %v935, 4294901760
        %v937 = vsub.f32 %v935, %v936
        %v938 = vand.u32 %v937, 4294901760
        %939 = vmatpush.msra.mxu0 %v938
        %v940 = vand.u32 %v397, 4294901760
        %v941 = vsub.f32 %v397, %v940
        %v942 = vand.u32 %v941, 4294901760
        %v943 = vsub.f32 %v941, %v942
        %v944 = vand.u32 %v943, 4294901760
        %945 = vmatpush.msra.mxu0 %v944
        %v946 = vand.u32 %v395, 4294901760
        %v947 = vsub.f32 %v395, %v946
        %v948 = vand.u32 %v947, 4294901760
        %v949 = vsub.f32 %v947, %v948
        %v950 = vand.u32 %v949, 4294901760
        %951 = vmatpush.msra.mxu0 %v950
        %v952 = vand.u32 %v393, 4294901760
        %v953 = vsub.f32 %v393, %v952
        %v954 = vand.u32 %v953, 4294901760
        %v955 = vsub.f32 %v953, %v954
        %v956 = vand.u32 %v955, 4294901760
        %957 = vmatpush.msra.mxu0 %v956
        %v958 = vand.u32 %v391, 4294901760
        %v959 = vsub.f32 %v391, %v958
        %v960 = vand.u32 %v959, 4294901760
        %v961 = vsub.f32 %v959, %v960
        %v962 = vand.u32 %v961, 4294901760
        %963 = vmatpush.msra.mxu0 %v962
        %v964 = vand.u32 %v389, 4294901760
        %v965 = vsub.f32 %v389, %v964
        %v966 = vand.u32 %v965, 4294901760
        %v967 = vsub.f32 %v965, %v966
        %v968 = vand.u32 %v967, 4294901760
        %969 = vmatpush.msra.mxu0 %v968
        %v970 = vand.u32 %v387, 4294901760
        %v971 = vsub.f32 %v387, %v970
        %v972 = vand.u32 %v971, 4294901760
        %v973 = vsub.f32 %v971, %v972
        %v974 = vand.u32 %v973, 4294901760
        %975 = vmatpush.msra.mxu0 %v974
        %v976 = vand.u32 %v385, 4294901760
        %v977 = vsub.f32 %v385, %v976
        %v978 = vand.u32 %v977, 4294901760
        %v979 = vsub.f32 %v977, %v978
        %v980 = vand.u32 %v979, 4294901760
        %981 = vmatpush.msra.mxu0 %v980
        %v982 = vand.u32 %v402, 4294901760
        %983 = vmatmul.f32.gmra.mxu0 %v982
        %v984 = vpop.f32.mrf.mxu0
        %v985 = vadd.f32 %v876, %v984
        %v986 = vand.u32 %v405, 4294901760
        %987 = vmatmul.f32.gmra.mxu0 %v986
        %v988 = vpop.f32.mrf.mxu0
        %v989 = vadd.f32 %v884, %v988
        %v990 = vand.u32 %v408, 4294901760
        %991 = vmatmul.f32.gmra.mxu0 %v990
        %v992 = vpop.f32.mrf.mxu0
        %v993 = vadd.f32 %v892, %v992
        %v994 = vand.u32 %v411, 4294901760
        %995 = vmatmul.f32.gmra.mxu0 %v994
        %v996 = vpop.f32.mrf.mxu0
        %v997 = vadd.f32 %v900, %v996
        %v998 = vand.u32 %v414, 4294901760
        %999 = vmatmul.f32.gmra.mxu0 %v998
        %v1000 = vpop.f32.mrf.mxu0
        %v1001 = vadd.f32 %v908, %v1000
        %v1002 = vand.u32 %v417, 4294901760
        %1003 = vmatmul.f32.gmra.mxu0 %v1002
        %v1004 = vpop.f32.mrf.mxu0
        %v1005 = vadd.f32 %v916, %v1004
        %v1006 = vand.u32 %v420, 4294901760
        %1007 = vmatmul.f32.gmra.mxu0 %v1006
        %v1008 = vpop.f32.mrf.mxu0
        %v1009 = vadd.f32 %v924, %v1008
        %1010 = vdwg.mxu0
        %1011 = vmatpush.msra.mxu0 0.0
        %1012 = vmatpush.msra.mxu0 0.0
        %1013 = vmatpush.msra.mxu0 0.0
        %1014 = vmatpush.msra.mxu0 0.0
        %1015 = vmatpush.msra.mxu0 0.0
        %1016 = vmatpush.msra.mxu0 0.0
        %1017 = vmatpush.msra.mxu0 0.0
        %1018 = vmatpush.msra.mxu0 0.0
        %v1019 = vand.u32 %v399, 4294901760
        %v1020 = vsub.f32 %v399, %v1019
        %1021 = vmatpush.msra.mxu0 %v1020
        %v1022 = vand.u32 %v397, 4294901760
        %v1023 = vsub.f32 %v397, %v1022
        %1024 = vmatpush.msra.mxu0 %v1023
        %v1025 = vand.u32 %v395, 4294901760
        %v1026 = vsub.f32 %v395, %v1025
        %1027 = vmatpush.msra.mxu0 %v1026
        %v1028 = vand.u32 %v393, 4294901760
        %v1029 = vsub.f32 %v393, %v1028
        %1030 = vmatpush.msra.mxu0 %v1029
        %v1031 = vand.u32 %v391, 4294901760
        %v1032 = vsub.f32 %v391, %v1031
        %1033 = vmatpush.msra.mxu0 %v1032
        %v1034 = vand.u32 %v389, 4294901760
        %v1035 = vsub.f32 %v389, %v1034
        %1036 = vmatpush.msra.mxu0 %v1035
        %v1037 = vand.u32 %v387, 4294901760
        %v1038 = vsub.f32 %v387, %v1037
        %1039 = vmatpush.msra.mxu0 %v1038
        %v1040 = vand.u32 %v385, 4294901760
        %v1041 = vsub.f32 %v385, %v1040
        %1042 = vmatpush.msra.mxu0 %v1041
        %v1043 = vand.u32 %v402, 4294901760
        %v1044 = vsub.f32 %v402, %v1043
        %1045 = vmatmul.f32.gmra.mxu0 %v1044
        %v1046 = vpop.f32.mrf.mxu0
        %v1047 = vadd.f32 %v985, %v1046
        %v1048 = vand.u32 %v405, 4294901760
        %v1049 = vsub.f32 %v405, %v1048
        %1050 = vmatmul.f32.gmra.mxu0 %v1049
        %v1051 = vpop.f32.mrf.mxu0
        %v1052 = vadd.f32 %v989, %v1051
        %v1053 = vand.u32 %v408, 4294901760
        %v1054 = vsub.f32 %v408, %v1053
        %1055 = vmatmul.f32.gmra.mxu0 %v1054
        %v1056 = vpop.f32.mrf.mxu0
        %v1057 = vadd.f32 %v993, %v1056
        %v1058 = vand.u32 %v411, 4294901760
        %v1059 = vsub.f32 %v411, %v1058
        %1060 = vmatmul.f32.gmra.mxu0 %v1059
        %v1061 = vpop.f32.mrf.mxu0
        %v1062 = vadd.f32 %v997, %v1061
        %v1063 = vand.u32 %v414, 4294901760
        %v1064 = vsub.f32 %v414, %v1063
        %1065 = vmatmul.f32.gmra.mxu0 %v1064
        %v1066 = vpop.f32.mrf.mxu0
        %v1067 = vadd.f32 %v1001, %v1066
        %v1068 = vand.u32 %v417, 4294901760
        %v1069 = vsub.f32 %v417, %v1068
        %1070 = vmatmul.f32.gmra.mxu0 %v1069
        %v1071 = vpop.f32.mrf.mxu0
        %v1072 = vadd.f32 %v1005, %v1071
        %v1073 = vand.u32 %v420, 4294901760
        %v1074 = vsub.f32 %v420, %v1073
        %1075 = vmatmul.f32.gmra.mxu0 %v1074
        %v1076 = vpop.f32.mrf.mxu0
        %v1077 = vadd.f32 %v1009, %v1076
        %1078 = vdwg.mxu0
        %1079 = vmatpush.msra.mxu0 0.0
        %1080 = vmatpush.msra.mxu0 0.0
        %1081 = vmatpush.msra.mxu0 0.0
        %1082 = vmatpush.msra.mxu0 0.0
        %1083 = vmatpush.msra.mxu0 0.0
        %1084 = vmatpush.msra.mxu0 0.0
        %1085 = vmatpush.msra.mxu0 0.0
        %1086 = vmatpush.msra.mxu0 0.0
        %v1087 = vand.u32 %v399, 4294901760
        %1088 = vmatpush.msra.mxu0 %v1087
        %v1089 = vand.u32 %v397, 4294901760
        %1090 = vmatpush.msra.mxu0 %v1089
        %v1091 = vand.u32 %v395, 4294901760
        %1092 = vmatpush.msra.mxu0 %v1091
        %v1093 = vand.u32 %v393, 4294901760
        %1094 = vmatpush.msra.mxu0 %v1093
        %v1095 = vand.u32 %v391, 4294901760
        %1096 = vmatpush.msra.mxu0 %v1095
        %v1097 = vand.u32 %v389, 4294901760
        %1098 = vmatpush.msra.mxu0 %v1097
        %v1099 = vand.u32 %v387, 4294901760
        %1100 = vmatpush.msra.mxu0 %v1099
        %v1101 = vand.u32 %v385, 4294901760
        %1102 = vmatpush.msra.mxu0 %v1101
        %v1103 = vand.u32 %v402, 4294901760
        %v1104 = vsub.f32 %v402, %v1103
        %v1105 = vand.u32 %v1104, 4294901760
        %1106 = vmatmul.f32.gmra.mxu0 %v1105
        %v1107 = vpop.f32.mrf.mxu0
        %v1108 = vadd.f32 %v1047, %v1107
        %v1109 = vand.u32 %v405, 4294901760
        %v1110 = vsub.f32 %v405, %v1109
        %v1111 = vand.u32 %v1110, 4294901760
        %1112 = vmatmul.f32.gmra.mxu0 %v1111
        %v1113 = vpop.f32.mrf.mxu0
        %v1114 = vadd.f32 %v1052, %v1113
        %v1115 = vand.u32 %v408, 4294901760
        %v1116 = vsub.f32 %v408, %v1115
        %v1117 = vand.u32 %v1116, 4294901760
        %1118 = vmatmul.f32.gmra.mxu0 %v1117
        %v1119 = vpop.f32.mrf.mxu0
        %v1120 = vadd.f32 %v1057, %v1119
        %v1121 = vand.u32 %v411, 4294901760
        %v1122 = vsub.f32 %v411, %v1121
        %v1123 = vand.u32 %v1122, 4294901760
        %1124 = vmatmul.f32.gmra.mxu0 %v1123
        %v1125 = vpop.f32.mrf.mxu0
        %v1126 = vadd.f32 %v1062, %v1125
        %v1127 = vand.u32 %v414, 4294901760
        %v1128 = vsub.f32 %v414, %v1127
        %v1129 = vand.u32 %v1128, 4294901760
        %1130 = vmatmul.f32.gmra.mxu0 %v1129
        %v1131 = vpop.f32.mrf.mxu0
        %v1132 = vadd.f32 %v1067, %v1131
        %v1133 = vand.u32 %v417, 4294901760
        %v1134 = vsub.f32 %v417, %v1133
        %v1135 = vand.u32 %v1134, 4294901760
        %1136 = vmatmul.f32.gmra.mxu0 %v1135
        %v1137 = vpop.f32.mrf.mxu0
        %v1138 = vadd.f32 %v1072, %v1137
        %v1139 = vand.u32 %v420, 4294901760
        %v1140 = vsub.f32 %v420, %v1139
        %v1141 = vand.u32 %v1140, 4294901760
        %1142 = vmatmul.f32.gmra.mxu0 %v1141
        %v1143 = vpop.f32.mrf.mxu0
        %v1144 = vadd.f32 %v1077, %v1143
        %1145 = vdwg.mxu0
        %1146 = vmatpush.msra.mxu0 0.0
        %1147 = vmatpush.msra.mxu0 0.0
        %1148 = vmatpush.msra.mxu0 0.0
        %1149 = vmatpush.msra.mxu0 0.0
        %1150 = vmatpush.msra.mxu0 0.0
        %1151 = vmatpush.msra.mxu0 0.0
        %1152 = vmatpush.msra.mxu0 0.0
        %1153 = vmatpush.msra.mxu0 0.0
        %v1154 = vand.u32 %v399, 4294901760
        %v1155 = vsub.f32 %v399, %v1154
        %v1156 = vand.u32 %v1155, 4294901760
        %1157 = vmatpush.msra.mxu0 %v1156
        %v1158 = vand.u32 %v397, 4294901760
        %v1159 = vsub.f32 %v397, %v1158
        %v1160 = vand.u32 %v1159, 4294901760
        %1161 = vmatpush.msra.mxu0 %v1160
        %v1162 = vand.u32 %v395, 4294901760
        %v1163 = vsub.f32 %v395, %v1162
        %v1164 = vand.u32 %v1163, 4294901760
        %1165 = vmatpush.msra.mxu0 %v1164
        %v1166 = vand.u32 %v393, 4294901760
        %v1167 = vsub.f32 %v393, %v1166
        %v1168 = vand.u32 %v1167, 4294901760
        %1169 = vmatpush.msra.mxu0 %v1168
        %v1170 = vand.u32 %v391, 4294901760
        %v1171 = vsub.f32 %v391, %v1170
        %v1172 = vand.u32 %v1171, 4294901760
        %1173 = vmatpush.msra.mxu0 %v1172
        %v1174 = vand.u32 %v389, 4294901760
        %v1175 = vsub.f32 %v389, %v1174
        %v1176 = vand.u32 %v1175, 4294901760
        %1177 = vmatpush.msra.mxu0 %v1176
        %v1178 = vand.u32 %v387, 4294901760
        %v1179 = vsub.f32 %v387, %v1178
        %v1180 = vand.u32 %v1179, 4294901760
        %1181 = vmatpush.msra.mxu0 %v1180
        %v1182 = vand.u32 %v385, 4294901760
        %v1183 = vsub.f32 %v385, %v1182
        %v1184 = vand.u32 %v1183, 4294901760
        %1185 = vmatpush.msra.mxu0 %v1184
        %v1186 = vand.u32 %v402, 4294901760
        %1187 = vmatmul.f32.gmra.mxu0 %v1186
        %v1188 = vpop.f32.mrf.mxu0
        %v1189 = vadd.f32 %v1108, %v1188
        %v1190 = vand.u32 %v405, 4294901760
        %1191 = vmatmul.f32.gmra.mxu0 %v1190
        %v1192 = vpop.f32.mrf.mxu0
        %v1193 = vadd.f32 %v1114, %v1192
        %v1194 = vand.u32 %v408, 4294901760
        %1195 = vmatmul.f32.gmra.mxu0 %v1194
        %v1196 = vpop.f32.mrf.mxu0
        %v1197 = vadd.f32 %v1120, %v1196
        %v1198 = vand.u32 %v411, 4294901760
        %1199 = vmatmul.f32.gmra.mxu0 %v1198
        %v1200 = vpop.f32.mrf.mxu0
        %v1201 = vadd.f32 %v1126, %v1200
        %v1202 = vand.u32 %v414, 4294901760
        %1203 = vmatmul.f32.gmra.mxu0 %v1202
        %v1204 = vpop.f32.mrf.mxu0
        %v1205 = vadd.f32 %v1132, %v1204
        %v1206 = vand.u32 %v417, 4294901760
        %1207 = vmatmul.f32.gmra.mxu0 %v1206
        %v1208 = vpop.f32.mrf.mxu0
        %v1209 = vadd.f32 %v1138, %v1208
        %v1210 = vand.u32 %v420, 4294901760
        %1211 = vmatmul.f32.gmra.mxu0 %v1210
        %v1212 = vpop.f32.mrf.mxu0
        %v1213 = vadd.f32 %v1144, %v1212
        %1214 = vdwg.mxu0
        %1215 = vmatpush.msra.mxu0 0.0
        %1216 = vmatpush.msra.mxu0 0.0
        %1217 = vmatpush.msra.mxu0 0.0
        %1218 = vmatpush.msra.mxu0 0.0
        %1219 = vmatpush.msra.mxu0 0.0
        %1220 = vmatpush.msra.mxu0 0.0
        %1221 = vmatpush.msra.mxu0 0.0
        %1222 = vmatpush.msra.mxu0 0.0
        %v1223 = vand.u32 %v399, 4294901760
        %1224 = vmatpush.msra.mxu0 %v1223
        %v1225 = vand.u32 %v397, 4294901760
        %1226 = vmatpush.msra.mxu0 %v1225
        %v1227 = vand.u32 %v395, 4294901760
        %1228 = vmatpush.msra.mxu0 %v1227
        %v1229 = vand.u32 %v393, 4294901760
        %1230 = vmatpush.msra.mxu0 %v1229
        %v1231 = vand.u32 %v391, 4294901760
        %1232 = vmatpush.msra.mxu0 %v1231
        %v1233 = vand.u32 %v389, 4294901760
        %1234 = vmatpush.msra.mxu0 %v1233
        %v1235 = vand.u32 %v387, 4294901760
        %1236 = vmatpush.msra.mxu0 %v1235
        %v1237 = vand.u32 %v385, 4294901760
        %1238 = vmatpush.msra.mxu0 %v1237
        %v1239 = vand.u32 %v402, 4294901760
        %1240 = vmatmul.f32.gmra.mxu0 %v1239
        %v1241 = vpop.f32.mrf.mxu0
        %v1242 = vadd.f32 %v1189, %v1241
        %v1243 = vand.u32 %v405, 4294901760
        %1244 = vmatmul.f32.gmra.mxu0 %v1243
        %v1245 = vpop.f32.mrf.mxu0
        %v1246 = vadd.f32 %v1193, %v1245
        %v1247 = vand.u32 %v408, 4294901760
        %1248 = vmatmul.f32.gmra.mxu0 %v1247
        %v1249 = vpop.f32.mrf.mxu0
        %v1250 = vadd.f32 %v1197, %v1249
        %v1251 = vand.u32 %v411, 4294901760
        %1252 = vmatmul.f32.gmra.mxu0 %v1251
        %v1253 = vpop.f32.mrf.mxu0
        %v1254 = vadd.f32 %v1201, %v1253
        %v1255 = vand.u32 %v414, 4294901760
        %1256 = vmatmul.f32.gmra.mxu0 %v1255
        %v1257 = vpop.f32.mrf.mxu0
        %v1258 = vadd.f32 %v1205, %v1257
        %v1259 = vand.u32 %v417, 4294901760
        %1260 = vmatmul.f32.gmra.mxu0 %v1259
        %v1261 = vpop.f32.mrf.mxu0
        %v1262 = vadd.f32 %v1209, %v1261
        %v1263 = vand.u32 %v420, 4294901760
        %1264 = vmatmul.f32.gmra.mxu0 %v1263
        %v1265 = vpop.f32.mrf.mxu0
        %v1266 = vadd.f32 %v1213, %v1265
        %1267 = vdwg.mxu0
        %1268 = vrot.lane.b32.xlu0 %v819, 76
        %v1269 = vpop.permute.xlu0 %1268
        %1270 = vrot.lane.b32.xlu0 %v823, 76
        %v1271 = vpop.permute.xlu0 %1270
        %1272 = vrot.lane.b32.xlu0 %v827, 76
        %v1273 = vpop.permute.xlu0 %1272
        %1274 = vrot.lane.b32.xlu0 %v831, 76
        %v1275 = vpop.permute.xlu0 %1274
        %1276 = vrot.lane.b32.xlu0 %v835, 76
        %v1277 = vpop.permute.xlu0 %1276
        %1278 = vrot.lane.b32.xlu0 %v839, 76
        %v1279 = vpop.permute.xlu0 %1278
        %1280 = vrot.lane.b32.xlu0 %v843, 76
        %v1281 = vpop.permute.xlu0 %1280
        %1282 = vrot.lane.b32.xlu0 %v1242, 76
        %v1283 = vpop.permute.xlu0 %1282
        %1284 = vrot.lane.b32.xlu0 %v1246, 76
        %v1285 = vpop.permute.xlu0 %1284
        %1286 = vrot.lane.b32.xlu0 %v1250, 76
        %v1287 = vpop.permute.xlu0 %1286
        %1288 = vrot.lane.b32.xlu0 %v1254, 76
        %v1289 = vpop.permute.xlu0 %1288
        %1290 = vrot.lane.b32.xlu0 %v1258, 76
        %v1291 = vpop.permute.xlu0 %1290
        %1292 = vrot.lane.b32.xlu0 %v1262, 76
        %v1293 = vpop.permute.xlu0 %1292
        %1294 = vrot.lane.b32.xlu0 %v1266, 76
        %v1295 = vpop.permute.xlu0 %1294
        %v1296 = vlaneseq
        %v1297 = vand.u32 %v1296, 127
        %vm1298 = vcmp.lt.s32.totalorder %v1297, 76
        %v1299 = vsel %vm1298, %v1269, %v1283
        %v1300 = vsel %vm1298, %v1271, %v1285
        %v1301 = vsel %vm1298, %v1273, %v1287
        %v1302 = vsel %vm1298, %v1275, %v1289
        %v1303 = vsel %vm1298, %v1277, %v1291
        %v1304 = vsel %vm1298, %v1279, %v1293
        %v1305 = vsel %vm1298, %v1281, %v1295
        %v1306 = vsel %vm1298, %v1283, %v1269
        %v1307 = vsel %vm1298, %v1285, %v1271
        %v1308 = vsel %vm1298, %v1287, %v1273
        %v1309 = vsel %vm1298, %v1289, %v1275
        %v1310 = vsel %vm1298, %v1291, %v1277
        %v1311 = vsel %vm1298, %v1293, %v1279
        %v1312 = vsel %vm1298, %v1295, %v1281
        %s1314 = sor.u32 256, 97
        %1315 = vrot.lane.b32.xlu0 %v1299, %s1314
        %v1316 = vpop.permute.xlu0 %1315
        %s1318 = sor.u32 256, 97
        %1319 = vrot.lane.b32.xlu0 %v1306, %s1318
        %v1320 = vpop.permute.xlu0 %1319
        %v1321 = vlaneseq
        %v1322 = vshrl.u32 %v1321, 7
        %v1323 = vadd.s32 %v1322, 97
        %vm1324 = vcmp.lt.s32.totalorder %v1297, %v1323
        %v1325 = vsel %vm1324, %v1316, %v1320
        %v1326 = vsel %vm1324, %v1320, %v1316
        %v1327 = vmul.f32 %v1326, %v352
        %v1328 = vmul.f32 %v1325, %v353
        %v1329 = vrot.slane %v1327, 4
        %v1330 = vadd.f32 %v1327, %v1329
        %v1331 = vrot.slane %v1330, 2
        %v1332 = vadd.f32 %v1330, %v1331
        %v1333 = vrot.slane %v1332, 1
        %v1334 = vadd.f32 %v1332, %v1333
        %v1335 = vrot.slane %v1328, 4
        %v1336 = vadd.f32 %v1328, %v1335
        %v1337 = vrot.slane %v1336, 2
        %v1338 = vadd.f32 %v1336, %v1337
        %v1339 = vrot.slane %v1338, 1
        %v1340 = vadd.f32 %v1338, %v1339
        %s1342 = sor.u32 256, 81
        %1343 = vrot.lane.b32.xlu0 %v1300, %s1342
        %v1344 = vpop.permute.xlu0 %1343
        %s1346 = sor.u32 256, 81
        %1347 = vrot.lane.b32.xlu0 %v1307, %s1346
        %v1348 = vpop.permute.xlu0 %1347
        %v1349 = vadd.s32 %v1322, 81
        %vm1350 = vcmp.lt.s32.totalorder %v1297, %v1349
        %v1351 = vsel %vm1350, %v1344, %v1348
        %v1352 = vsel %vm1350, %v1348, %v1344
        %v1353 = vmul.f32 %v1352, %v354
        %v1354 = vmul.f32 %v1351, %v355
        %v1355 = vrot.slane %v1353, 4
        %v1356 = vadd.f32 %v1353, %v1355
        %v1357 = vrot.slane %v1356, 2
        %v1358 = vadd.f32 %v1356, %v1357
        %v1359 = vrot.slane %v1358, 1
        %v1360 = vadd.f32 %v1358, %v1359
        %v1361 = vrot.slane %v1354, 4
        %v1362 = vadd.f32 %v1354, %v1361
        %v1363 = vrot.slane %v1362, 2
        %v1364 = vadd.f32 %v1362, %v1363
        %v1365 = vrot.slane %v1364, 1
        %v1366 = vadd.f32 %v1364, %v1365
        %s1368 = sor.u32 256, 65
        %1369 = vrot.lane.b32.xlu0 %v1301, %s1368
        %v1370 = vpop.permute.xlu0 %1369
        %s1372 = sor.u32 256, 65
        %1373 = vrot.lane.b32.xlu0 %v1308, %s1372
        %v1374 = vpop.permute.xlu0 %1373
        %v1375 = vadd.s32 %v1322, 65
        %vm1376 = vcmp.lt.s32.totalorder %v1297, %v1375
        %v1377 = vsel %vm1376, %v1370, %v1374
        %v1378 = vsel %vm1376, %v1374, %v1370
        %v1379 = vmul.f32 %v1378, %v356
        %v1380 = vmul.f32 %v1377, %v357
        %v1381 = vrot.slane %v1379, 4
        %v1382 = vadd.f32 %v1379, %v1381
        %v1383 = vrot.slane %v1382, 2
        %v1384 = vadd.f32 %v1382, %v1383
        %v1385 = vrot.slane %v1384, 1
        %v1386 = vadd.f32 %v1384, %v1385
        %v1387 = vrot.slane %v1380, 4
        %v1388 = vadd.f32 %v1380, %v1387
        %v1389 = vrot.slane %v1388, 2
        %v1390 = vadd.f32 %v1388, %v1389
        %v1391 = vrot.slane %v1390, 1
        %v1392 = vadd.f32 %v1390, %v1391
        %s1394 = sor.u32 256, 49
        %1395 = vrot.lane.b32.xlu0 %v1302, %s1394
        %v1396 = vpop.permute.xlu0 %1395
        %s1398 = sor.u32 256, 49
        %1399 = vrot.lane.b32.xlu0 %v1309, %s1398
        %v1400 = vpop.permute.xlu0 %1399
        %v1401 = vadd.s32 %v1322, 49
        %vm1402 = vcmp.lt.s32.totalorder %v1297, %v1401
        %v1403 = vsel %vm1402, %v1396, %v1400
        %v1404 = vsel %vm1402, %v1400, %v1396
        %v1405 = vmul.f32 %v1404, %v358
        %v1406 = vmul.f32 %v1403, %v359
        %v1407 = vrot.slane %v1405, 4
        %v1408 = vadd.f32 %v1405, %v1407
        %v1409 = vrot.slane %v1408, 2
        %v1410 = vadd.f32 %v1408, %v1409
        %v1411 = vrot.slane %v1410, 1
        %v1412 = vadd.f32 %v1410, %v1411
        %v1413 = vrot.slane %v1406, 4
        %v1414 = vadd.f32 %v1406, %v1413
        %v1415 = vrot.slane %v1414, 2
        %v1416 = vadd.f32 %v1414, %v1415
        %v1417 = vrot.slane %v1416, 1
        %v1418 = vadd.f32 %v1416, %v1417
        %s1420 = sor.u32 256, 33
        %1421 = vrot.lane.b32.xlu0 %v1303, %s1420
        %v1422 = vpop.permute.xlu0 %1421
        %s1424 = sor.u32 256, 33
        %1425 = vrot.lane.b32.xlu0 %v1310, %s1424
        %v1426 = vpop.permute.xlu0 %1425
        %v1427 = vadd.s32 %v1322, 33
        %vm1428 = vcmp.lt.s32.totalorder %v1297, %v1427
        %v1429 = vsel %vm1428, %v1422, %v1426
        %v1430 = vsel %vm1428, %v1426, %v1422
        %v1431 = vmul.f32 %v1430, %v360
        %v1432 = vmul.f32 %v1429, %v361
        %v1433 = vrot.slane %v1431, 4
        %v1434 = vadd.f32 %v1431, %v1433
        %v1435 = vrot.slane %v1434, 2
        %v1436 = vadd.f32 %v1434, %v1435
        %v1437 = vrot.slane %v1436, 1
        %v1438 = vadd.f32 %v1436, %v1437
        %v1439 = vrot.slane %v1432, 4
        %v1440 = vadd.f32 %v1432, %v1439
        %v1441 = vrot.slane %v1440, 2
        %v1442 = vadd.f32 %v1440, %v1441
        %v1443 = vrot.slane %v1442, 1
        %v1444 = vadd.f32 %v1442, %v1443
        %s1446 = sor.u32 256, 17
        %1447 = vrot.lane.b32.xlu0 %v1304, %s1446
        %v1448 = vpop.permute.xlu0 %1447
        %s1450 = sor.u32 256, 17
        %1451 = vrot.lane.b32.xlu0 %v1311, %s1450
        %v1452 = vpop.permute.xlu0 %1451
        %v1453 = vadd.s32 %v1322, 17
        %vm1454 = vcmp.lt.s32.totalorder %v1297, %v1453
        %v1455 = vsel %vm1454, %v1448, %v1452
        %v1456 = vsel %vm1454, %v1452, %v1448
        %v1457 = vmul.f32 %v1456, %v362
        %v1458 = vmul.f32 %v1455, %v363
        %v1459 = vrot.slane %v1457, 4
        %v1460 = vadd.f32 %v1457, %v1459
        %v1461 = vrot.slane %v1460, 2
        %v1462 = vadd.f32 %v1460, %v1461
        %v1463 = vrot.slane %v1462, 1
        %v1464 = vadd.f32 %v1462, %v1463
        %v1465 = vrot.slane %v1458, 4
        %v1466 = vadd.f32 %v1458, %v1465
        %v1467 = vrot.slane %v1466, 2
        %v1468 = vadd.f32 %v1466, %v1467
        %v1469 = vrot.slane %v1468, 1
        %v1470 = vadd.f32 %v1468, %v1469
        %s1472 = sor.u32 256, 1
        %1473 = vrot.lane.b32.xlu0 %v1305, %s1472
        %v1474 = vpop.permute.xlu0 %1473
        %s1476 = sor.u32 256, 1
        %1477 = vrot.lane.b32.xlu0 %v1312, %s1476
        %v1478 = vpop.permute.xlu0 %1477
        %v1479 = vadd.s32 %v1322, 1
        %vm1480 = vcmp.lt.s32.totalorder %v1297, %v1479
        %v1481 = vsel %vm1480, %v1474, %v1478
        %v1482 = vsel %vm1480, %v1478, %v1474
        %v1483 = vmul.f32 %v1482, %v364
        %v1484 = vmul.f32 %v1481, %v365
        %v1485 = vrot.slane %v1483, 4
        %v1486 = vadd.f32 %v1483, %v1485
        %v1487 = vrot.slane %v1486, 2
        %v1488 = vadd.f32 %v1486, %v1487
        %v1489 = vrot.slane %v1488, 1
        %v1490 = vadd.f32 %v1488, %v1489
        %v1491 = vrot.slane %v1484, 4
        %v1492 = vadd.f32 %v1484, %v1491
        %v1493 = vrot.slane %v1492, 2
        %v1494 = vadd.f32 %v1492, %v1493
        %v1495 = vrot.slane %v1494, 1
        %v1496 = vadd.f32 %v1494, %v1495
        %v1497 = vadd.f32 %v1334, %v1360
        %v1498 = vadd.f32 %v1340, %v1366
        %v1499 = vadd.f32 %v1386, %v1412
        %v1500 = vadd.f32 %v1392, %v1418
        %v1501 = vadd.f32 %v1497, %v1499
        %v1502 = vadd.f32 %v1498, %v1500
        %v1503 = vadd.f32 %v1438, %v1464
        %v1504 = vadd.f32 %v1444, %v1470
        %v1505 = vadd.f32 %v1503, %v1490
        %v1506 = vadd.f32 %v1504, %v1496
        %v1507 = vadd.f32 %v1501, %v1505
        %v1508 = vadd.f32 %v1502, %v1506
        %v1509 = vstv %s344
        %v1510 = vadd.f32 %v1507, %v1509
        %v1511 = vadd.f32 %v1508, %v1509
        %v1512 = vxor.u32 %v1510, 2147483648
        %v1513 = vxor.u32 %v1511, 2147483648
        %v1514 = vmul.f32 %v1512, 1.442695
        %v1515 = vpow.pop %v1514
        %v1516 = vmul.f32 %v1513, 1.442695
        %v1517 = vpow.pop %v1516
        %v1518 = vadd.f32 %v1515, 1.0
        %v1519 = vadd.f32 %v1517, 1.0
        %v1520 = vrcp.pop %v1518
        %v1521 = vmul.f32 %v1518, %v1520
        %v1522 = vsub.f32 1.0, %v1521
        %v1523 = vmul.f32 %v1520, %v1522
        %v1524 = vadd.f32 %v1520, %v1523
        %vm1525 = vweird.f32 %v1518
        %vm1526 = vweird.f32 %v1520
        %vm1527 = vmor %vm1525, %vm1526
        %v1528 = vsel %vm1527, %v1520, %v1524
        %v1529 = vand.u32 2147483647, %v1518
        %vm1530 = vcmp.eq.f32.partialorder %v1529, 8.507059e+37
        %v1531 = vand.u32 %v1518, 2147483648
        %v1532 = vor.u32 1.1754944e-38, %v1531
        %v1533 = vsel %vm1530, %v1532, %v1528
        %v1534 = vmul.f32 1.0, %v1533
        %v1535 = vrcp.pop %v1519
        %v1536 = vmul.f32 %v1519, %v1535
        %v1537 = vsub.f32 1.0, %v1536
        %v1538 = vmul.f32 %v1535, %v1537
        %v1539 = vadd.f32 %v1535, %v1538
        %vm1540 = vweird.f32 %v1519
        %vm1541 = vweird.f32 %v1535
        %vm1542 = vmor %vm1540, %vm1541
        %v1543 = vsel %vm1542, %v1535, %v1539
        %v1544 = vand.u32 2147483647, %v1519
        %vm1545 = vcmp.eq.f32.partialorder %v1544, 8.507059e+37
        %v1546 = vand.u32 %v1519, 2147483648
        %v1547 = vor.u32 1.1754944e-38, %v1546
        %v1548 = vsel %vm1545, %v1547, %v1543
        %v1549 = vmul.f32 1.0, %v1548
        %v1550 = vadd.f32 %v384, %v385
        %1551 = vadd.xlane.f32.xlu0 %v1550
        %v1552 = vpop.xlane.xlu0 %1551
        %v1553 = vadd.f32 %v386, %v387
        %1554 = vadd.xlane.f32.xlu0 %v1553
        %v1555 = vpop.xlane.xlu0 %1554
        %v1556 = vadd.f32 %v388, %v389
        %1557 = vadd.xlane.f32.xlu0 %v1556
        %v1558 = vpop.xlane.xlu0 %1557
        %v1559 = vadd.f32 %v390, %v391
        %1560 = vadd.xlane.f32.xlu0 %v1559
        %v1561 = vpop.xlane.xlu0 %1560
        %v1562 = vadd.f32 %v392, %v393
        %1563 = vadd.xlane.f32.xlu0 %v1562
        %v1564 = vpop.xlane.xlu0 %1563
        %v1565 = vadd.f32 %v394, %v395
        %1566 = vadd.xlane.f32.xlu0 %v1565
        %v1567 = vpop.xlane.xlu0 %1566
        %v1568 = vadd.f32 %v396, %v397
        %1569 = vadd.xlane.f32.xlu0 %v1568
        %v1570 = vpop.xlane.xlu0 %1569
        %v1571 = vadd.f32 %v398, %v399
        %1572 = vadd.xlane.f32.xlu0 %v1571
        %v1573 = vpop.xlane.xlu0 %1572
        %v1574 = vmul.f32 %v1552, 0.00390625
        %v1575 = vmul.f32 %v1555, 0.00390625
        %v1576 = vmul.f32 %v1558, 0.00390625
        %v1577 = vmul.f32 %v1561, 0.00390625
        %v1578 = vmul.f32 %v1564, 0.00390625
        %v1579 = vmul.f32 %v1567, 0.00390625
        %v1580 = vmul.f32 %v1570, 0.00390625
        %v1581 = vmul.f32 %v1573, 0.00390625
        %v1583 = vsel %vm400, %v366, 0
        %1585 = vmatpush.msra.mxu0 0.0
        %1586 = vmatpush.msra.mxu0 0.0
        %1587 = vmatpush.msra.mxu0 0.0
        %1588 = vmatpush.msra.mxu0 0.0
        %1589 = vmatpush.msra.mxu0 0.0
        %1590 = vmatpush.msra.mxu0 0.0
        %1591 = vmatpush.msra.mxu0 0.0
        %1592 = vmatpush.msra.mxu0 0.0
        %v1593 = vand.u32 %v1581, 4294901760
        %1594 = vmatpush.msra.mxu0 %v1593
        %v1595 = vand.u32 %v1580, 4294901760
        %1596 = vmatpush.msra.mxu0 %v1595
        %v1597 = vand.u32 %v1579, 4294901760
        %1598 = vmatpush.msra.mxu0 %v1597
        %v1599 = vand.u32 %v1578, 4294901760
        %1600 = vmatpush.msra.mxu0 %v1599
        %v1601 = vand.u32 %v1577, 4294901760
        %1602 = vmatpush.msra.mxu0 %v1601
        %v1603 = vand.u32 %v1576, 4294901760
        %1604 = vmatpush.msra.mxu0 %v1603
        %v1605 = vand.u32 %v1575, 4294901760
        %1606 = vmatpush.msra.mxu0 %v1605
        %v1607 = vand.u32 %v1574, 4294901760
        %1608 = vmatpush.msra.mxu0 %v1607
        %v1609 = vand.u32 %v1583, 4294901760
        %v1610 = vsub.f32 %v1583, %v1609
        %v1611 = vand.u32 %v1610, 4294901760
        %v1612 = vsub.f32 %v1610, %v1611
        %v1613 = vand.u32 %v1612, 4294901760
        %1614 = vmatmul.f32.gmra.mxu0 %v1613
        %v1615 = vpop.f32.mrf.mxu0
        %v1616 = vadd.f32 %v367, %v1615
        %1617 = vdwg.mxu0
        %1618 = vmatpush.msra.mxu0 0.0
        %1619 = vmatpush.msra.mxu0 0.0
        %1620 = vmatpush.msra.mxu0 0.0
        %1621 = vmatpush.msra.mxu0 0.0
        %1622 = vmatpush.msra.mxu0 0.0
        %1623 = vmatpush.msra.mxu0 0.0
        %1624 = vmatpush.msra.mxu0 0.0
        %1625 = vmatpush.msra.mxu0 0.0
        %v1626 = vand.u32 %v1581, 4294901760
        %v1627 = vsub.f32 %v1581, %v1626
        %v1628 = vand.u32 %v1627, 4294901760
        %v1629 = vsub.f32 %v1627, %v1628
        %v1630 = vand.u32 %v1629, 4294901760
        %1631 = vmatpush.msra.mxu0 %v1630
        %v1632 = vand.u32 %v1580, 4294901760
        %v1633 = vsub.f32 %v1580, %v1632
        %v1634 = vand.u32 %v1633, 4294901760
        %v1635 = vsub.f32 %v1633, %v1634
        %v1636 = vand.u32 %v1635, 4294901760
        %1637 = vmatpush.msra.mxu0 %v1636
        %v1638 = vand.u32 %v1579, 4294901760
        %v1639 = vsub.f32 %v1579, %v1638
        %v1640 = vand.u32 %v1639, 4294901760
        %v1641 = vsub.f32 %v1639, %v1640
        %v1642 = vand.u32 %v1641, 4294901760
        %1643 = vmatpush.msra.mxu0 %v1642
        %v1644 = vand.u32 %v1578, 4294901760
        %v1645 = vsub.f32 %v1578, %v1644
        %v1646 = vand.u32 %v1645, 4294901760
        %v1647 = vsub.f32 %v1645, %v1646
        %v1648 = vand.u32 %v1647, 4294901760
        %1649 = vmatpush.msra.mxu0 %v1648
        %v1650 = vand.u32 %v1577, 4294901760
        %v1651 = vsub.f32 %v1577, %v1650
        %v1652 = vand.u32 %v1651, 4294901760
        %v1653 = vsub.f32 %v1651, %v1652
        %v1654 = vand.u32 %v1653, 4294901760
        %1655 = vmatpush.msra.mxu0 %v1654
        %v1656 = vand.u32 %v1576, 4294901760
        %v1657 = vsub.f32 %v1576, %v1656
        %v1658 = vand.u32 %v1657, 4294901760
        %v1659 = vsub.f32 %v1657, %v1658
        %v1660 = vand.u32 %v1659, 4294901760
        %1661 = vmatpush.msra.mxu0 %v1660
        %v1662 = vand.u32 %v1575, 4294901760
        %v1663 = vsub.f32 %v1575, %v1662
        %v1664 = vand.u32 %v1663, 4294901760
        %v1665 = vsub.f32 %v1663, %v1664
        %v1666 = vand.u32 %v1665, 4294901760
        %1667 = vmatpush.msra.mxu0 %v1666
        %v1668 = vand.u32 %v1574, 4294901760
        %v1669 = vsub.f32 %v1574, %v1668
        %v1670 = vand.u32 %v1669, 4294901760
        %v1671 = vsub.f32 %v1669, %v1670
        %v1672 = vand.u32 %v1671, 4294901760
        %1673 = vmatpush.msra.mxu0 %v1672
        %v1674 = vand.u32 %v1583, 4294901760
        %1675 = vmatmul.f32.gmra.mxu0 %v1674
        %v1676 = vpop.f32.mrf.mxu0
        %v1677 = vadd.f32 %v1616, %v1676
        %1678 = vdwg.mxu0
        %1679 = vmatpush.msra.mxu0 0.0
        %1680 = vmatpush.msra.mxu0 0.0
        %1681 = vmatpush.msra.mxu0 0.0
        %1682 = vmatpush.msra.mxu0 0.0
        %1683 = vmatpush.msra.mxu0 0.0
        %1684 = vmatpush.msra.mxu0 0.0
        %1685 = vmatpush.msra.mxu0 0.0
        %1686 = vmatpush.msra.mxu0 0.0
        %v1687 = vand.u32 %v1581, 4294901760
        %v1688 = vsub.f32 %v1581, %v1687
        %1689 = vmatpush.msra.mxu0 %v1688
        %v1690 = vand.u32 %v1580, 4294901760
        %v1691 = vsub.f32 %v1580, %v1690
        %1692 = vmatpush.msra.mxu0 %v1691
        %v1693 = vand.u32 %v1579, 4294901760
        %v1694 = vsub.f32 %v1579, %v1693
        %1695 = vmatpush.msra.mxu0 %v1694
        %v1696 = vand.u32 %v1578, 4294901760
        %v1697 = vsub.f32 %v1578, %v1696
        %1698 = vmatpush.msra.mxu0 %v1697
        %v1699 = vand.u32 %v1577, 4294901760
        %v1700 = vsub.f32 %v1577, %v1699
        %1701 = vmatpush.msra.mxu0 %v1700
        %v1702 = vand.u32 %v1576, 4294901760
        %v1703 = vsub.f32 %v1576, %v1702
        %1704 = vmatpush.msra.mxu0 %v1703
        %v1705 = vand.u32 %v1575, 4294901760
        %v1706 = vsub.f32 %v1575, %v1705
        %1707 = vmatpush.msra.mxu0 %v1706
        %v1708 = vand.u32 %v1574, 4294901760
        %v1709 = vsub.f32 %v1574, %v1708
        %1710 = vmatpush.msra.mxu0 %v1709
        %v1711 = vand.u32 %v1583, 4294901760
        %v1712 = vsub.f32 %v1583, %v1711
        %1713 = vmatmul.f32.gmra.mxu0 %v1712
        %v1714 = vpop.f32.mrf.mxu0
        %v1715 = vadd.f32 %v1677, %v1714
        %1716 = vdwg.mxu0
        %1717 = vmatpush.msra.mxu0 0.0
        %1718 = vmatpush.msra.mxu0 0.0
        %1719 = vmatpush.msra.mxu0 0.0
        %1720 = vmatpush.msra.mxu0 0.0
        %1721 = vmatpush.msra.mxu0 0.0
        %1722 = vmatpush.msra.mxu0 0.0
        %1723 = vmatpush.msra.mxu0 0.0
        %1724 = vmatpush.msra.mxu0 0.0
        %v1725 = vand.u32 %v1581, 4294901760
        %1726 = vmatpush.msra.mxu0 %v1725
        %v1727 = vand.u32 %v1580, 4294901760
        %1728 = vmatpush.msra.mxu0 %v1727
        %v1729 = vand.u32 %v1579, 4294901760
        %1730 = vmatpush.msra.mxu0 %v1729
        %v1731 = vand.u32 %v1578, 4294901760
        %1732 = vmatpush.msra.mxu0 %v1731
        %v1733 = vand.u32 %v1577, 4294901760
        %1734 = vmatpush.msra.mxu0 %v1733
        %v1735 = vand.u32 %v1576, 4294901760
        %1736 = vmatpush.msra.mxu0 %v1735
        %v1737 = vand.u32 %v1575, 4294901760
        %1738 = vmatpush.msra.mxu0 %v1737
        %v1739 = vand.u32 %v1574, 4294901760
        %1740 = vmatpush.msra.mxu0 %v1739
        %v1741 = vand.u32 %v1583, 4294901760
        %v1742 = vsub.f32 %v1583, %v1741
        %v1743 = vand.u32 %v1742, 4294901760
        %1744 = vmatmul.f32.gmra.mxu0 %v1743
        %v1745 = vpop.f32.mrf.mxu0
        %v1746 = vadd.f32 %v1715, %v1745
        %1747 = vdwg.mxu0
        %1748 = vmatpush.msra.mxu0 0.0
        %1749 = vmatpush.msra.mxu0 0.0
        %1750 = vmatpush.msra.mxu0 0.0
        %1751 = vmatpush.msra.mxu0 0.0
        %1752 = vmatpush.msra.mxu0 0.0
        %1753 = vmatpush.msra.mxu0 0.0
        %1754 = vmatpush.msra.mxu0 0.0
        %1755 = vmatpush.msra.mxu0 0.0
        %v1756 = vand.u32 %v1581, 4294901760
        %v1757 = vsub.f32 %v1581, %v1756
        %v1758 = vand.u32 %v1757, 4294901760
        %1759 = vmatpush.msra.mxu0 %v1758
        %v1760 = vand.u32 %v1580, 4294901760
        %v1761 = vsub.f32 %v1580, %v1760
        %v1762 = vand.u32 %v1761, 4294901760
        %1763 = vmatpush.msra.mxu0 %v1762
        %v1764 = vand.u32 %v1579, 4294901760
        %v1765 = vsub.f32 %v1579, %v1764
        %v1766 = vand.u32 %v1765, 4294901760
        %1767 = vmatpush.msra.mxu0 %v1766
        %v1768 = vand.u32 %v1578, 4294901760
        %v1769 = vsub.f32 %v1578, %v1768
        %v1770 = vand.u32 %v1769, 4294901760
        %1771 = vmatpush.msra.mxu0 %v1770
        %v1772 = vand.u32 %v1577, 4294901760
        %v1773 = vsub.f32 %v1577, %v1772
        %v1774 = vand.u32 %v1773, 4294901760
        %1775 = vmatpush.msra.mxu0 %v1774
        %v1776 = vand.u32 %v1576, 4294901760
        %v1777 = vsub.f32 %v1576, %v1776
        %v1778 = vand.u32 %v1777, 4294901760
        %1779 = vmatpush.msra.mxu0 %v1778
        %v1780 = vand.u32 %v1575, 4294901760
        %v1781 = vsub.f32 %v1575, %v1780
        %v1782 = vand.u32 %v1781, 4294901760
        %1783 = vmatpush.msra.mxu0 %v1782
        %v1784 = vand.u32 %v1574, 4294901760
        %v1785 = vsub.f32 %v1574, %v1784
        %v1786 = vand.u32 %v1785, 4294901760
        %1787 = vmatpush.msra.mxu0 %v1786
        %v1788 = vand.u32 %v1583, 4294901760
        %1789 = vmatmul.f32.gmra.mxu0 %v1788
        %v1790 = vpop.f32.mrf.mxu0
        %v1791 = vadd.f32 %v1746, %v1790
        %1792 = vdwg.mxu0
        %1793 = vmatpush.msra.mxu0 0.0
        %1794 = vmatpush.msra.mxu0 0.0
        %1795 = vmatpush.msra.mxu0 0.0
        %1796 = vmatpush.msra.mxu0 0.0
        %1797 = vmatpush.msra.mxu0 0.0
        %1798 = vmatpush.msra.mxu0 0.0
        %1799 = vmatpush.msra.mxu0 0.0
        %1800 = vmatpush.msra.mxu0 0.0
        %v1801 = vand.u32 %v1581, 4294901760
        %1802 = vmatpush.msra.mxu0 %v1801
        %v1803 = vand.u32 %v1580, 4294901760
        %1804 = vmatpush.msra.mxu0 %v1803
        %v1805 = vand.u32 %v1579, 4294901760
        %1806 = vmatpush.msra.mxu0 %v1805
        %v1807 = vand.u32 %v1578, 4294901760
        %1808 = vmatpush.msra.mxu0 %v1807
        %v1809 = vand.u32 %v1577, 4294901760
        %1810 = vmatpush.msra.mxu0 %v1809
        %v1811 = vand.u32 %v1576, 4294901760
        %1812 = vmatpush.msra.mxu0 %v1811
        %v1813 = vand.u32 %v1575, 4294901760
        %1814 = vmatpush.msra.mxu0 %v1813
        %v1815 = vand.u32 %v1574, 4294901760
        %1816 = vmatpush.msra.mxu0 %v1815
        %v1817 = vand.u32 %v1583, 4294901760
        %1818 = vmatmul.f32.gmra.mxu0 %v1817
        %v1819 = vpop.f32.mrf.mxu0
        %v1820 = vadd.f32 %v1791, %v1819
        %1821 = vdwg.mxu0
        %v1822 = vmax.f32 %v1820, 0.0
        %vm1823 = vcmask 31744
        %v1825 = vsel %vm1823, %v368, 0
        %v1828 = vsel %vm1823, %v369, 0
        %v1831 = vsel %vm1823, %v370, 0
        %v1834 = vsel %vm1823, %v371, 0
        %v1837 = vsel %vm1823, %v372, 0
        %v1840 = vsel %vm1823, %v373, 0
        %v1843 = vsel %vm1823, %v374, 0
        %v1846 = vsel %vm1823, %v375, 0
        %vm1848 = vcmask 1043456
        %v1850 = vsel %vm1848, %v1822, 0
        %1852 = vmatpush.msra.mxu0 0.0
        %1853 = vmatpush.msra.mxu0 0.0
        %1854 = vmatpush.msra.mxu0 0.0
        %1855 = vmatpush.msra.mxu0 0.0
        %1856 = vmatpush.msra.mxu0 0.0
        %1857 = vmatpush.msra.mxu0 0.0
        %1858 = vmatpush.msra.mxu0 0.0
        %1859 = vmatpush.msra.mxu0 0.0
        %1860 = vmatpush.msra.mxu0 0.0
        %1861 = vmatpush.msra.mxu0 0.0
        %1862 = vmatpush.msra.mxu0 0.0
        %1863 = vmatpush.msra.mxu0 0.0
        %1864 = vmatpush.msra.mxu0 0.0
        %1865 = vmatpush.msra.mxu0 0.0
        %1866 = vmatpush.msra.mxu0 0.0
        %v1867 = vand.u32 %v1850, 4294901760
        %1868 = vmatpush.msra.mxu0 %v1867
        %v1869 = vand.u32 %v1825, 4294901760
        %v1870 = vsub.f32 %v1825, %v1869
        %v1871 = vand.u32 %v1870, 4294901760
        %v1872 = vsub.f32 %v1870, %v1871
        %v1873 = vand.u32 %v1872, 4294901760
        %1874 = vmatmul.f32.gmra.mxu0 %v1873
        %v1875 = vpop.f32.mrf.mxu0
        %v1876 = vadd.f32 %v376, %v1875
        %v1877 = vand.u32 %v1828, 4294901760
        %v1878 = vsub.f32 %v1828, %v1877
        %v1879 = vand.u32 %v1878, 4294901760
        %v1880 = vsub.f32 %v1878, %v1879
        %v1881 = vand.u32 %v1880, 4294901760
        %1882 = vmatmul.f32.gmra.mxu0 %v1881
        %v1883 = vpop.f32.mrf.mxu0
        %v1884 = vadd.f32 %v377, %v1883
        %v1885 = vand.u32 %v1831, 4294901760
        %v1886 = vsub.f32 %v1831, %v1885
        %v1887 = vand.u32 %v1886, 4294901760
        %v1888 = vsub.f32 %v1886, %v1887
        %v1889 = vand.u32 %v1888, 4294901760
        %1890 = vmatmul.f32.gmra.mxu0 %v1889
        %v1891 = vpop.f32.mrf.mxu0
        %v1892 = vadd.f32 %v378, %v1891
        %v1893 = vand.u32 %v1834, 4294901760
        %v1894 = vsub.f32 %v1834, %v1893
        %v1895 = vand.u32 %v1894, 4294901760
        %v1896 = vsub.f32 %v1894, %v1895
        %v1897 = vand.u32 %v1896, 4294901760
        %1898 = vmatmul.f32.gmra.mxu0 %v1897
        %v1899 = vpop.f32.mrf.mxu0
        %v1900 = vadd.f32 %v379, %v1899
        %v1901 = vand.u32 %v1837, 4294901760
        %v1902 = vsub.f32 %v1837, %v1901
        %v1903 = vand.u32 %v1902, 4294901760
        %v1904 = vsub.f32 %v1902, %v1903
        %v1905 = vand.u32 %v1904, 4294901760
        %1906 = vmatmul.f32.gmra.mxu0 %v1905
        %v1907 = vpop.f32.mrf.mxu0
        %v1908 = vadd.f32 %v380, %v1907
        %v1909 = vand.u32 %v1840, 4294901760
        %v1910 = vsub.f32 %v1840, %v1909
        %v1911 = vand.u32 %v1910, 4294901760
        %v1912 = vsub.f32 %v1910, %v1911
        %v1913 = vand.u32 %v1912, 4294901760
        %1914 = vmatmul.f32.gmra.mxu0 %v1913
        %v1915 = vpop.f32.mrf.mxu0
        %v1916 = vadd.f32 %v381, %v1915
        %v1917 = vand.u32 %v1843, 4294901760
        %v1918 = vsub.f32 %v1843, %v1917
        %v1919 = vand.u32 %v1918, 4294901760
        %v1920 = vsub.f32 %v1918, %v1919
        %v1921 = vand.u32 %v1920, 4294901760
        %1922 = vmatmul.f32.gmra.mxu0 %v1921
        %v1923 = vpop.f32.mrf.mxu0
        %v1924 = vadd.f32 %v382, %v1923
        %v1925 = vand.u32 %v1846, 4294901760
        %v1926 = vsub.f32 %v1846, %v1925
        %v1927 = vand.u32 %v1926, 4294901760
        %v1928 = vsub.f32 %v1926, %v1927
        %v1929 = vand.u32 %v1928, 4294901760
        %1930 = vmatmul.f32.gmra.mxu0 %v1929
        %v1931 = vpop.f32.mrf.mxu0
        %v1932 = vadd.f32 %v383, %v1931
        %1933 = vdwg.mxu0
        %1934 = vmatpush.msra.mxu0 0.0
        %1935 = vmatpush.msra.mxu0 0.0
        %1936 = vmatpush.msra.mxu0 0.0
        %1937 = vmatpush.msra.mxu0 0.0
        %1938 = vmatpush.msra.mxu0 0.0
        %1939 = vmatpush.msra.mxu0 0.0
        %1940 = vmatpush.msra.mxu0 0.0
        %1941 = vmatpush.msra.mxu0 0.0
        %1942 = vmatpush.msra.mxu0 0.0
        %1943 = vmatpush.msra.mxu0 0.0
        %1944 = vmatpush.msra.mxu0 0.0
        %1945 = vmatpush.msra.mxu0 0.0
        %1946 = vmatpush.msra.mxu0 0.0
        %1947 = vmatpush.msra.mxu0 0.0
        %1948 = vmatpush.msra.mxu0 0.0
        %v1949 = vand.u32 %v1850, 4294901760
        %v1950 = vsub.f32 %v1850, %v1949
        %v1951 = vand.u32 %v1950, 4294901760
        %v1952 = vsub.f32 %v1950, %v1951
        %v1953 = vand.u32 %v1952, 4294901760
        %1954 = vmatpush.msra.mxu0 %v1953
        %v1955 = vand.u32 %v1825, 4294901760
        %1956 = vmatmul.f32.gmra.mxu0 %v1955
        %v1957 = vpop.f32.mrf.mxu0
        %v1958 = vadd.f32 %v1876, %v1957
        %v1959 = vand.u32 %v1828, 4294901760
        %1960 = vmatmul.f32.gmra.mxu0 %v1959
        %v1961 = vpop.f32.mrf.mxu0
        %v1962 = vadd.f32 %v1884, %v1961
        %v1963 = vand.u32 %v1831, 4294901760
        %1964 = vmatmul.f32.gmra.mxu0 %v1963
        %v1965 = vpop.f32.mrf.mxu0
        %v1966 = vadd.f32 %v1892, %v1965
        %v1967 = vand.u32 %v1834, 4294901760
        %1968 = vmatmul.f32.gmra.mxu0 %v1967
        %v1969 = vpop.f32.mrf.mxu0
        %v1970 = vadd.f32 %v1900, %v1969
        %v1971 = vand.u32 %v1837, 4294901760
        %1972 = vmatmul.f32.gmra.mxu0 %v1971
        %v1973 = vpop.f32.mrf.mxu0
        %v1974 = vadd.f32 %v1908, %v1973
        %v1975 = vand.u32 %v1840, 4294901760
        %1976 = vmatmul.f32.gmra.mxu0 %v1975
        %v1977 = vpop.f32.mrf.mxu0
        %v1978 = vadd.f32 %v1916, %v1977
        %v1979 = vand.u32 %v1843, 4294901760
        %1980 = vmatmul.f32.gmra.mxu0 %v1979
        %v1981 = vpop.f32.mrf.mxu0
        %v1982 = vadd.f32 %v1924, %v1981
        %v1983 = vand.u32 %v1846, 4294901760
        %1984 = vmatmul.f32.gmra.mxu0 %v1983
        %v1985 = vpop.f32.mrf.mxu0
        %v1986 = vadd.f32 %v1932, %v1985
        %1987 = vdwg.mxu0
        %1988 = vmatpush.msra.mxu0 0.0
        %1989 = vmatpush.msra.mxu0 0.0
        %1990 = vmatpush.msra.mxu0 0.0
        %1991 = vmatpush.msra.mxu0 0.0
        %1992 = vmatpush.msra.mxu0 0.0
        %1993 = vmatpush.msra.mxu0 0.0
        %1994 = vmatpush.msra.mxu0 0.0
        %1995 = vmatpush.msra.mxu0 0.0
        %1996 = vmatpush.msra.mxu0 0.0
        %1997 = vmatpush.msra.mxu0 0.0
        %1998 = vmatpush.msra.mxu0 0.0
        %1999 = vmatpush.msra.mxu0 0.0
        %2000 = vmatpush.msra.mxu0 0.0
        %2001 = vmatpush.msra.mxu0 0.0
        %2002 = vmatpush.msra.mxu0 0.0
        %v2003 = vand.u32 %v1850, 4294901760
        %v2004 = vsub.f32 %v1850, %v2003
        %2005 = vmatpush.msra.mxu0 %v2004
        %v2006 = vand.u32 %v1825, 4294901760
        %v2007 = vsub.f32 %v1825, %v2006
        %2008 = vmatmul.f32.gmra.mxu0 %v2007
        %v2009 = vpop.f32.mrf.mxu0
        %v2010 = vadd.f32 %v1958, %v2009
        %v2011 = vand.u32 %v1828, 4294901760
        %v2012 = vsub.f32 %v1828, %v2011
        %2013 = vmatmul.f32.gmra.mxu0 %v2012
        %v2014 = vpop.f32.mrf.mxu0
        %v2015 = vadd.f32 %v1962, %v2014
        %v2016 = vand.u32 %v1831, 4294901760
        %v2017 = vsub.f32 %v1831, %v2016
        %2018 = vmatmul.f32.gmra.mxu0 %v2017
        %v2019 = vpop.f32.mrf.mxu0
        %v2020 = vadd.f32 %v1966, %v2019
        %v2021 = vand.u32 %v1834, 4294901760
        %v2022 = vsub.f32 %v1834, %v2021
        %2023 = vmatmul.f32.gmra.mxu0 %v2022
        %v2024 = vpop.f32.mrf.mxu0
        %v2025 = vadd.f32 %v1970, %v2024
        %v2026 = vand.u32 %v1837, 4294901760
        %v2027 = vsub.f32 %v1837, %v2026
        %2028 = vmatmul.f32.gmra.mxu0 %v2027
        %v2029 = vpop.f32.mrf.mxu0
        %v2030 = vadd.f32 %v1974, %v2029
        %v2031 = vand.u32 %v1840, 4294901760
        %v2032 = vsub.f32 %v1840, %v2031
        %2033 = vmatmul.f32.gmra.mxu0 %v2032
        %v2034 = vpop.f32.mrf.mxu0
        %v2035 = vadd.f32 %v1978, %v2034
        %v2036 = vand.u32 %v1843, 4294901760
        %v2037 = vsub.f32 %v1843, %v2036
        %2038 = vmatmul.f32.gmra.mxu0 %v2037
        %v2039 = vpop.f32.mrf.mxu0
        %v2040 = vadd.f32 %v1982, %v2039
        %v2041 = vand.u32 %v1846, 4294901760
        %v2042 = vsub.f32 %v1846, %v2041
        %2043 = vmatmul.f32.gmra.mxu0 %v2042
        %v2044 = vpop.f32.mrf.mxu0
        %v2045 = vadd.f32 %v1986, %v2044
        %2046 = vdwg.mxu0
        %2047 = vmatpush.msra.mxu0 0.0
        %2048 = vmatpush.msra.mxu0 0.0
        %2049 = vmatpush.msra.mxu0 0.0
        %2050 = vmatpush.msra.mxu0 0.0
        %2051 = vmatpush.msra.mxu0 0.0
        %2052 = vmatpush.msra.mxu0 0.0
        %2053 = vmatpush.msra.mxu0 0.0
        %2054 = vmatpush.msra.mxu0 0.0
        %2055 = vmatpush.msra.mxu0 0.0
        %2056 = vmatpush.msra.mxu0 0.0
        %2057 = vmatpush.msra.mxu0 0.0
        %2058 = vmatpush.msra.mxu0 0.0
        %2059 = vmatpush.msra.mxu0 0.0
        %2060 = vmatpush.msra.mxu0 0.0
        %2061 = vmatpush.msra.mxu0 0.0
        %v2062 = vand.u32 %v1850, 4294901760
        %2063 = vmatpush.msra.mxu0 %v2062
        %v2064 = vand.u32 %v1825, 4294901760
        %v2065 = vsub.f32 %v1825, %v2064
        %v2066 = vand.u32 %v2065, 4294901760
        %2067 = vmatmul.f32.gmra.mxu0 %v2066
        %v2068 = vpop.f32.mrf.mxu0
        %v2069 = vadd.f32 %v2010, %v2068
        %v2070 = vand.u32 %v1828, 4294901760
        %v2071 = vsub.f32 %v1828, %v2070
        %v2072 = vand.u32 %v2071, 4294901760
        %2073 = vmatmul.f32.gmra.mxu0 %v2072
        %v2074 = vpop.f32.mrf.mxu0
        %v2075 = vadd.f32 %v2015, %v2074
        %v2076 = vand.u32 %v1831, 4294901760
        %v2077 = vsub.f32 %v1831, %v2076
        %v2078 = vand.u32 %v2077, 4294901760
        %2079 = vmatmul.f32.gmra.mxu0 %v2078
        %v2080 = vpop.f32.mrf.mxu0
        %v2081 = vadd.f32 %v2020, %v2080
        %v2082 = vand.u32 %v1834, 4294901760
        %v2083 = vsub.f32 %v1834, %v2082
        %v2084 = vand.u32 %v2083, 4294901760
        %2085 = vmatmul.f32.gmra.mxu0 %v2084
        %v2086 = vpop.f32.mrf.mxu0
        %v2087 = vadd.f32 %v2025, %v2086
        %v2088 = vand.u32 %v1837, 4294901760
        %v2089 = vsub.f32 %v1837, %v2088
        %v2090 = vand.u32 %v2089, 4294901760
        %2091 = vmatmul.f32.gmra.mxu0 %v2090
        %v2092 = vpop.f32.mrf.mxu0
        %v2093 = vadd.f32 %v2030, %v2092
        %v2094 = vand.u32 %v1840, 4294901760
        %v2095 = vsub.f32 %v1840, %v2094
        %v2096 = vand.u32 %v2095, 4294901760
        %2097 = vmatmul.f32.gmra.mxu0 %v2096
        %v2098 = vpop.f32.mrf.mxu0
        %v2099 = vadd.f32 %v2035, %v2098
        %v2100 = vand.u32 %v1843, 4294901760
        %v2101 = vsub.f32 %v1843, %v2100
        %v2102 = vand.u32 %v2101, 4294901760
        %2103 = vmatmul.f32.gmra.mxu0 %v2102
        %v2104 = vpop.f32.mrf.mxu0
        %v2105 = vadd.f32 %v2040, %v2104
        %v2106 = vand.u32 %v1846, 4294901760
        %v2107 = vsub.f32 %v1846, %v2106
        %v2108 = vand.u32 %v2107, 4294901760
        %2109 = vmatmul.f32.gmra.mxu0 %v2108
        %v2110 = vpop.f32.mrf.mxu0
        %v2111 = vadd.f32 %v2045, %v2110
        %2112 = vdwg.mxu0
        %2113 = vmatpush.msra.mxu0 0.0
        %2114 = vmatpush.msra.mxu0 0.0
        %2115 = vmatpush.msra.mxu0 0.0
        %2116 = vmatpush.msra.mxu0 0.0
        %2117 = vmatpush.msra.mxu0 0.0
        %2118 = vmatpush.msra.mxu0 0.0
        %2119 = vmatpush.msra.mxu0 0.0
        %2120 = vmatpush.msra.mxu0 0.0
        %2121 = vmatpush.msra.mxu0 0.0
        %2122 = vmatpush.msra.mxu0 0.0
        %2123 = vmatpush.msra.mxu0 0.0
        %2124 = vmatpush.msra.mxu0 0.0
        %2125 = vmatpush.msra.mxu0 0.0
        %2126 = vmatpush.msra.mxu0 0.0
        %2127 = vmatpush.msra.mxu0 0.0
        %v2128 = vand.u32 %v1850, 4294901760
        %v2129 = vsub.f32 %v1850, %v2128
        %v2130 = vand.u32 %v2129, 4294901760
        %2131 = vmatpush.msra.mxu0 %v2130
        %v2132 = vand.u32 %v1825, 4294901760
        %2133 = vmatmul.f32.gmra.mxu0 %v2132
        %v2134 = vpop.f32.mrf.mxu0
        %v2135 = vadd.f32 %v2069, %v2134
        %v2136 = vand.u32 %v1828, 4294901760
        %2137 = vmatmul.f32.gmra.mxu0 %v2136
        %v2138 = vpop.f32.mrf.mxu0
        %v2139 = vadd.f32 %v2075, %v2138
        %v2140 = vand.u32 %v1831, 4294901760
        %2141 = vmatmul.f32.gmra.mxu0 %v2140
        %v2142 = vpop.f32.mrf.mxu0
        %v2143 = vadd.f32 %v2081, %v2142
        %v2144 = vand.u32 %v1834, 4294901760
        %2145 = vmatmul.f32.gmra.mxu0 %v2144
        %v2146 = vpop.f32.mrf.mxu0
        %v2147 = vadd.f32 %v2087, %v2146
        %v2148 = vand.u32 %v1837, 4294901760
        %2149 = vmatmul.f32.gmra.mxu0 %v2148
        %v2150 = vpop.f32.mrf.mxu0
        %v2151 = vadd.f32 %v2093, %v2150
        %v2152 = vand.u32 %v1840, 4294901760
        %2153 = vmatmul.f32.gmra.mxu0 %v2152
        %v2154 = vpop.f32.mrf.mxu0
        %v2155 = vadd.f32 %v2099, %v2154
        %v2156 = vand.u32 %v1843, 4294901760
        %2157 = vmatmul.f32.gmra.mxu0 %v2156
        %v2158 = vpop.f32.mrf.mxu0
        %v2159 = vadd.f32 %v2105, %v2158
        %v2160 = vand.u32 %v1846, 4294901760
        %2161 = vmatmul.f32.gmra.mxu0 %v2160
        %v2162 = vpop.f32.mrf.mxu0
        %v2163 = vadd.f32 %v2111, %v2162
        %2164 = vdwg.mxu0
        %2165 = vmatpush.msra.mxu0 0.0
        %2166 = vmatpush.msra.mxu0 0.0
        %2167 = vmatpush.msra.mxu0 0.0
        %2168 = vmatpush.msra.mxu0 0.0
        %2169 = vmatpush.msra.mxu0 0.0
        %2170 = vmatpush.msra.mxu0 0.0
        %2171 = vmatpush.msra.mxu0 0.0
        %2172 = vmatpush.msra.mxu0 0.0
        %2173 = vmatpush.msra.mxu0 0.0
        %2174 = vmatpush.msra.mxu0 0.0
        %2175 = vmatpush.msra.mxu0 0.0
        %2176 = vmatpush.msra.mxu0 0.0
        %2177 = vmatpush.msra.mxu0 0.0
        %2178 = vmatpush.msra.mxu0 0.0
        %2179 = vmatpush.msra.mxu0 0.0
        %v2180 = vand.u32 %v1850, 4294901760
        %2181 = vmatpush.msra.mxu0 %v2180
        %v2182 = vand.u32 %v1825, 4294901760
        %2183 = vmatmul.f32.gmra.mxu0 %v2182
        %v2184 = vpop.f32.mrf.mxu0
        %v2185 = vadd.f32 %v2135, %v2184
        %v2186 = vand.u32 %v1828, 4294901760
        %2187 = vmatmul.f32.gmra.mxu0 %v2186
        %v2188 = vpop.f32.mrf.mxu0
        %v2189 = vadd.f32 %v2139, %v2188
        %v2190 = vand.u32 %v1831, 4294901760
        %2191 = vmatmul.f32.gmra.mxu0 %v2190
        %v2192 = vpop.f32.mrf.mxu0
        %v2193 = vadd.f32 %v2143, %v2192
        %v2194 = vand.u32 %v1834, 4294901760
        %2195 = vmatmul.f32.gmra.mxu0 %v2194
        %v2196 = vpop.f32.mrf.mxu0
        %v2197 = vadd.f32 %v2147, %v2196
        %v2198 = vand.u32 %v1837, 4294901760
        %2199 = vmatmul.f32.gmra.mxu0 %v2198
        %v2200 = vpop.f32.mrf.mxu0
        %v2201 = vadd.f32 %v2151, %v2200
        %v2202 = vand.u32 %v1840, 4294901760
        %2203 = vmatmul.f32.gmra.mxu0 %v2202
        %v2204 = vpop.f32.mrf.mxu0
        %v2205 = vadd.f32 %v2155, %v2204
        %v2206 = vand.u32 %v1843, 4294901760
        %2207 = vmatmul.f32.gmra.mxu0 %v2206
        %v2208 = vpop.f32.mrf.mxu0
        %v2209 = vadd.f32 %v2159, %v2208
        %v2210 = vand.u32 %v1846, 4294901760
        %2211 = vmatmul.f32.gmra.mxu0 %v2210
        %v2212 = vpop.f32.mrf.mxu0
        %v2213 = vadd.f32 %v2163, %v2212
        %2214 = vdwg.mxu0
        %v2215 = vxor.u32 %v2185, 2147483648
        %v2216 = vxor.u32 %v2189, 2147483648
        %v2217 = vxor.u32 %v2193, 2147483648
        %v2218 = vxor.u32 %v2197, 2147483648
        %v2219 = vxor.u32 %v2201, 2147483648
        %v2220 = vxor.u32 %v2205, 2147483648
        %v2221 = vxor.u32 %v2209, 2147483648
        %v2222 = vxor.u32 %v2213, 2147483648
        %v2223 = vmul.f32 %v2215, 1.442695
        %v2224 = vpow.pop %v2223
        %v2225 = vmul.f32 %v2216, 1.442695
        %v2226 = vpow.pop %v2225
        %v2227 = vmul.f32 %v2217, 1.442695
        %v2228 = vpow.pop %v2227
        %v2229 = vmul.f32 %v2218, 1.442695
        %v2230 = vpow.pop %v2229
        %v2231 = vmul.f32 %v2219, 1.442695
        %v2232 = vpow.pop %v2231
        %v2233 = vmul.f32 %v2220, 1.442695
        %v2234 = vpow.pop %v2233
        %v2235 = vmul.f32 %v2221, 1.442695
        %v2236 = vpow.pop %v2235
        %v2237 = vmul.f32 %v2222, 1.442695
        %v2238 = vpow.pop %v2237
        %v2239 = vadd.f32 %v2224, 1.0
        %v2240 = vadd.f32 %v2226, 1.0
        %v2241 = vadd.f32 %v2228, 1.0
        %v2242 = vadd.f32 %v2230, 1.0
        %v2243 = vadd.f32 %v2232, 1.0
        %v2244 = vadd.f32 %v2234, 1.0
        %v2245 = vadd.f32 %v2236, 1.0
        %v2246 = vadd.f32 %v2238, 1.0
        %v2247 = vrcp.pop %v2239
        %v2248 = vmul.f32 %v2239, %v2247
        %v2249 = vsub.f32 1.0, %v2248
        %v2250 = vmul.f32 %v2247, %v2249
        %v2251 = vadd.f32 %v2247, %v2250
        %vm2252 = vweird.f32 %v2239
        %vm2253 = vweird.f32 %v2247
        %vm2254 = vmor %vm2252, %vm2253
        %v2255 = vsel %vm2254, %v2247, %v2251
        %v2256 = vand.u32 2147483647, %v2239
        %vm2257 = vcmp.eq.f32.partialorder %v2256, 8.507059e+37
        %v2258 = vand.u32 %v2239, 2147483648
        %v2259 = vor.u32 1.1754944e-38, %v2258
        %v2260 = vsel %vm2257, %v2259, %v2255
        %v2261 = vmul.f32 1.0, %v2260
        %v2262 = vrcp.pop %v2240
        %v2263 = vmul.f32 %v2240, %v2262
        %v2264 = vsub.f32 1.0, %v2263
        %v2265 = vmul.f32 %v2262, %v2264
        %v2266 = vadd.f32 %v2262, %v2265
        %vm2267 = vweird.f32 %v2240
        %vm2268 = vweird.f32 %v2262
        %vm2269 = vmor %vm2267, %vm2268
        %v2270 = vsel %vm2269, %v2262, %v2266
        %v2271 = vand.u32 2147483647, %v2240
        %vm2272 = vcmp.eq.f32.partialorder %v2271, 8.507059e+37
        %v2273 = vand.u32 %v2240, 2147483648
        %v2274 = vor.u32 1.1754944e-38, %v2273
        %v2275 = vsel %vm2272, %v2274, %v2270
        %v2276 = vmul.f32 1.0, %v2275
        %v2277 = vrcp.pop %v2241
        %v2278 = vmul.f32 %v2241, %v2277
        %v2279 = vsub.f32 1.0, %v2278
        %v2280 = vmul.f32 %v2277, %v2279
        %v2281 = vadd.f32 %v2277, %v2280
        %vm2282 = vweird.f32 %v2241
        %vm2283 = vweird.f32 %v2277
        %vm2284 = vmor %vm2282, %vm2283
        %v2285 = vsel %vm2284, %v2277, %v2281
        %v2286 = vand.u32 2147483647, %v2241
        %vm2287 = vcmp.eq.f32.partialorder %v2286, 8.507059e+37
        %v2288 = vand.u32 %v2241, 2147483648
        %v2289 = vor.u32 1.1754944e-38, %v2288
        %v2290 = vsel %vm2287, %v2289, %v2285
        %v2291 = vmul.f32 1.0, %v2290
        %v2292 = vrcp.pop %v2242
        %v2293 = vmul.f32 %v2242, %v2292
        %v2294 = vsub.f32 1.0, %v2293
        %v2295 = vmul.f32 %v2292, %v2294
        %v2296 = vadd.f32 %v2292, %v2295
        %vm2297 = vweird.f32 %v2242
        %vm2298 = vweird.f32 %v2292
        %vm2299 = vmor %vm2297, %vm2298
        %v2300 = vsel %vm2299, %v2292, %v2296
        %v2301 = vand.u32 2147483647, %v2242
        %vm2302 = vcmp.eq.f32.partialorder %v2301, 8.507059e+37
        %v2303 = vand.u32 %v2242, 2147483648
        %v2304 = vor.u32 1.1754944e-38, %v2303
        %v2305 = vsel %vm2302, %v2304, %v2300
        %v2306 = vmul.f32 1.0, %v2305
        %v2307 = vrcp.pop %v2243
        %v2308 = vmul.f32 %v2243, %v2307
        %v2309 = vsub.f32 1.0, %v2308
        %v2310 = vmul.f32 %v2307, %v2309
        %v2311 = vadd.f32 %v2307, %v2310
        %vm2312 = vweird.f32 %v2243
        %vm2313 = vweird.f32 %v2307
        %vm2314 = vmor %vm2312, %vm2313
        %v2315 = vsel %vm2314, %v2307, %v2311
        %v2316 = vand.u32 2147483647, %v2243
        %vm2317 = vcmp.eq.f32.partialorder %v2316, 8.507059e+37
        %v2318 = vand.u32 %v2243, 2147483648
        %v2319 = vor.u32 1.1754944e-38, %v2318
        %v2320 = vsel %vm2317, %v2319, %v2315
        %v2321 = vmul.f32 1.0, %v2320
        %v2322 = vrcp.pop %v2244
        %v2323 = vmul.f32 %v2244, %v2322
        %v2324 = vsub.f32 1.0, %v2323
        %v2325 = vmul.f32 %v2322, %v2324
        %v2326 = vadd.f32 %v2322, %v2325
        %vm2327 = vweird.f32 %v2244
        %vm2328 = vweird.f32 %v2322
        %vm2329 = vmor %vm2327, %vm2328
        %v2330 = vsel %vm2329, %v2322, %v2326
        %v2331 = vand.u32 2147483647, %v2244
        %vm2332 = vcmp.eq.f32.partialorder %v2331, 8.507059e+37
        %v2333 = vand.u32 %v2244, 2147483648
        %v2334 = vor.u32 1.1754944e-38, %v2333
        %v2335 = vsel %vm2332, %v2334, %v2330
        %v2336 = vmul.f32 1.0, %v2335
        %v2337 = vrcp.pop %v2245
        %v2338 = vmul.f32 %v2245, %v2337
        %v2339 = vsub.f32 1.0, %v2338
        %v2340 = vmul.f32 %v2337, %v2339
        %v2341 = vadd.f32 %v2337, %v2340
        %vm2342 = vweird.f32 %v2245
        %vm2343 = vweird.f32 %v2337
        %vm2344 = vmor %vm2342, %vm2343
        %v2345 = vsel %vm2344, %v2337, %v2341
        %v2346 = vand.u32 2147483647, %v2245
        %vm2347 = vcmp.eq.f32.partialorder %v2346, 8.507059e+37
        %v2348 = vand.u32 %v2245, 2147483648
        %v2349 = vor.u32 1.1754944e-38, %v2348
        %v2350 = vsel %vm2347, %v2349, %v2345
        %v2351 = vmul.f32 1.0, %v2350
        %v2352 = vrcp.pop %v2246
        %v2353 = vmul.f32 %v2246, %v2352
        %v2354 = vsub.f32 1.0, %v2353
        %v2355 = vmul.f32 %v2352, %v2354
        %v2356 = vadd.f32 %v2352, %v2355
        %vm2357 = vweird.f32 %v2246
        %vm2358 = vweird.f32 %v2352
        %vm2359 = vmor %vm2357, %vm2358
        %v2360 = vsel %vm2359, %v2352, %v2356
        %v2361 = vand.u32 2147483647, %v2246
        %vm2362 = vcmp.eq.f32.partialorder %v2361, 8.507059e+37
        %v2363 = vand.u32 %v2246, 2147483648
        %v2364 = vor.u32 1.1754944e-38, %v2363
        %v2365 = vsel %vm2362, %v2364, %v2360
        %v2366 = vmul.f32 1.0, %v2365
        %2368 = vset.pattern.permute.xlu0 0
        %2369 = vperm.xlu0 %2368, %v2261
        %v2370 = vpop.permute.xlu0 %2369
        %2373 = vset.pattern.permute.xlu0 0
        %2374 = vperm.xlu0 %2373, %v2276
        %v2375 = vpop.permute.xlu0 %2374
        %2378 = vset.pattern.permute.xlu0 0
        %2379 = vperm.xlu0 %2378, %v2291
        %v2380 = vpop.permute.xlu0 %2379
        %2383 = vset.pattern.permute.xlu0 0
        %2384 = vperm.xlu0 %2383, %v2306
        %v2385 = vpop.permute.xlu0 %2384
        %2388 = vset.pattern.permute.xlu0 0
        %2389 = vperm.xlu0 %2388, %v2321
        %v2390 = vpop.permute.xlu0 %2389
        %2393 = vset.pattern.permute.xlu0 0
        %2394 = vperm.xlu0 %2393, %v2336
        %v2395 = vpop.permute.xlu0 %2394
        %2398 = vset.pattern.permute.xlu0 0
        %2399 = vperm.xlu0 %2398, %v2351
        %v2400 = vpop.permute.xlu0 %2399
        %2403 = vset.pattern.permute.xlu0 0
        %2404 = vperm.xlu0 %2403, %v2366
        %v2405 = vpop.permute.xlu0 %2404
        %v2407 = vadd.f32 %v2370, %v1534
        %v2408 = vadd.f32 %v2370, %v1549
        %v2409 = vadd.f32 %v2375, %v1534
        %v2410 = vadd.f32 %v2375, %v1549
        %v2411 = vadd.f32 %v2380, %v1534
        %v2412 = vadd.f32 %v2380, %v1549
        %v2413 = vadd.f32 %v2385, %v1534
        %v2414 = vadd.f32 %v2385, %v1549
        %v2415 = vadd.f32 %v2390, %v1534
        %v2416 = vadd.f32 %v2390, %v1549
        %v2417 = vadd.f32 %v2395, %v1534
        %v2418 = vadd.f32 %v2395, %v1549
        %v2419 = vadd.f32 %v2400, %v1534
        %v2420 = vadd.f32 %v2400, %v1549
        %v2421 = vadd.f32 %v2405, %v1534
        %v2422 = vadd.f32 %v2405, %v1549
        %v2423 = vmul.f32 %v384, %v2407
        %v2424 = vmul.f32 %v385, %v2408
        %v2425 = vmul.f32 %v386, %v2409
        %v2426 = vmul.f32 %v387, %v2410
        %v2427 = vmul.f32 %v388, %v2411
        %v2428 = vmul.f32 %v389, %v2412
        %v2429 = vmul.f32 %v390, %v2413
        %v2430 = vmul.f32 %v391, %v2414
        %v2431 = vmul.f32 %v392, %v2415
        %v2432 = vmul.f32 %v393, %v2416
        %v2433 = vmul.f32 %v394, %v2417
        %v2434 = vmul.f32 %v395, %v2418
        %v2435 = vmul.f32 %v396, %v2419
        %v2436 = vmul.f32 %v397, %v2420
        %v2437 = vmul.f32 %v398, %v2421
        %v2438 = vmul.f32 %v399, %v2422
        %2439 = vst [vmem:[%s343] sm:$0xff] %v2423
        %2440 = vst [vmem:[%s343 + $0x8] sm:$0xff] %v2424
        %2441 = vst [vmem:[%s343 + $0x10] sm:$0xff] %v2425
        %2442 = vst [vmem:[%s343 + $0x18] sm:$0xff] %v2426
        %2443 = vst [vmem:[%s343 + $0x20] sm:$0xff] %v2427
        %2444 = vst [vmem:[%s343 + $0x28] sm:$0xff] %v2428
        %2445 = vst [vmem:[%s343 + $0x30] sm:$0xff] %v2429
        %2446 = vst [vmem:[%s343 + $0x38] sm:$0xff] %v2430
        %2447 = vst [vmem:[%s343 + $0x40] sm:$0xff] %v2431
        %2448 = vst [vmem:[%s343 + $0x48] sm:$0xff] %v2432
        %2449 = vst [vmem:[%s343 + $0x50] sm:$0xff] %v2433
        %2450 = vst [vmem:[%s343 + $0x58] sm:$0xff] %v2434
        %2451 = vst [vmem:[%s343 + $0x60] sm:$0xff] %v2435
        %2452 = vst [vmem:[%s343 + $0x68] sm:$0xff] %v2436
        %2453 = vst [vmem:[%s343 + $0x70] sm:$0xff] %v2437
        %2454 = vst [vmem:[%s343 + $0x78] sm:$0xff] %v2438
        %s2455 = sand.u32 %s208, 1
        %s2456 = scalar_lea.sflag [#allocation5], %s2455
        %s2457 = sand.u32 %s208, 1
        %s2458 = smul.addr %s2457, 128
        %s2459 = scalar_lea.vmem [#allocation8], %s2458
        // Predicated region
        $region61: #{tpu_custom_call.1} parent=51 // pred_check
          %p2460 = pneg %p218
        $region62: #{tpu_custom_call.1} parent=51 // pred_check_branch
          %2462 = sbr.rel (%p2460) target = $region64
        $region63: #{tpu_custom_call.1} parent=51 // pred_region
          %2464 = vsyncadd %s2456, 0
          %s2465 = smul.addr %s27, 16
          %s2466 = smul.addr %s2465, 8
          %s2467 = scalar_lea.hbm %s8, %s2466
          %s2468 = sshll.u32 %s2459, 4
          %s2469 = int_to_ptr.vmem [resolvable:$true] %s2468
          %s2470 = sshll.u32 %s2467, 4
          %s2471 = int_to_ptr.hbm [resolvable:$true] %s2470
          %2476 = dma.vmem_to_hbm [thread:$0]  %s2469, 2048, %s2471, %s2456, 256, 256, 16
        $region64: #{tpu_custom_call.1} parent=51 // pred_fallthru
          _
      $region52: #{tpu_custom_call.1} parent=5 // pred_fallthru
        _
      %p2477 = scmp.le.s32.totalorder 2, %s22
      // Predicated region
      $region65: #{tpu_custom_call.1} parent=5 // pred_check
        %p2478 = pneg %p2477
      $region66: #{tpu_custom_call.1} parent=5 // pred_check_branch
        %2480 = sbr.rel (%p2478) target = $region68
      $region67: #{tpu_custom_call.1} parent=5 // pred_region
        %s2481 = ssub.s32 %s22, 2
        // Predicated region
        $region69: #{tpu_custom_call.1} parent=67 // pred_check
          %p2482 = pneg %p224
        $region70: #{tpu_custom_call.1} parent=67 // pred_check_branch
          %2484 = sbr.rel (%p2482) target = $region72
        $region71: #{tpu_custom_call.1} parent=67 // pred_region
          %s2485 = sand.u32 %s209, 1
          %s2486 = scalar_lea.sflag [#allocation5], %s2485
          %s2487 = sand.u32 %s209, 1
          %s2488 = smul.addr %s2487, 128
          %s2489 = scalar_lea.vmem [#allocation8], %s2488
          %2491 = dma.done %s2486, 2048
        $region72: #{tpu_custom_call.1} parent=67 // pred_fallthru
          _
      $region68: #{tpu_custom_call.1} parent=5 // pred_fallthru
        _
    $region6: #{tpu_custom_call.1} parent=1 // loop_footer
      %s26 = sadd.s32 1, %s22
    $region7: #{tpu_custom_call.1} parent=1 // loop_footer_branch
      %21 = sbr.rel target = $region3
    $region8: #{tpu_custom_call.1} parent=1 // loop_exit
      _
    %2492 = vsyncpa [#allocation4], 1
    %s2493 = scalar_lea.sflag [#allocation4], 1
    %2494 = vsyncpa %s2493, 1
    %2495 = vsyncpa [#allocation7], 1
    %2496 = vsyncpa [#allocation5], 1
    %s2497 = scalar_lea.sflag [#allocation5], 1
    %2498 = vsyncpa %s2497, 1

</llo_original>
